<compile_context>
chip_gen: v6e
topology: v6e:2x2x1
jax: 0.10.0
libtpu: 0.0.40
codegen_flags: <defaults>
</compile_context>

<pallas_src>
import jax
import jax.numpy as jnp
from jax.experimental import pallas as pl
from jax.experimental.pallas import tpu as pltpu

EPS = 1e-5


def upsampling_kernel(x_ref, wbig_ref, gamma_ref, beta_ref, o_ref, g_ref):
    # x_ref:     (D, H, W, Ci)        one batch element (batch dim squeezed)
    # wbig_ref:  (8*Ci, 8*Co)         fused neighbourhood x parity weight matrix
    # gamma_ref: (1, Ci), beta_ref: (1, Ci)
    # o_ref:     (Mp//2, 2*8*Co)      lane-dense output: lanes = (row-half s, parity p, out-ch co)
    # g_ref:     VMEM scratch (Dp, Hp, Wp, 8*Ci) -- the im2col matrix G, built in one pass
    D, H, W, Ci = x_ref.shape
    Dp, Hp, Wp = D + 1, H + 1, W + 1
    Mp = Dp * Hp * Wp
    K = 8 * Ci

    # ---- InstanceNorm3d: mean + centered variance (robust to cancellation), affine collapsed
    #      into a single per-channel scale/shift so the apply is 2 VPU ops per element. ----
    x = x_ref[...]
    inv_m = 1.0 / (D * H * W)
    mean = jnp.sum(x, axis=(0, 1, 2), keepdims=True) * inv_m          # (1,1,1,Ci)
    xc = x - mean
    var = jnp.sum(xc * xc, axis=(0, 1, 2), keepdims=True) * inv_m     # (1,1,1,Ci)
    scale = gamma_ref[...].reshape(1, 1, 1, Ci) * jax.lax.rsqrt(var + EPS)
    y = xc * scale + beta_ref[...].reshape(1, 1, 1, Ci)               # (D, H, W, Ci)

    # ---- Build G in a single pass (no padded scratch, no reshape+concat):
    #      zero only the six 1-voxel halo faces (full-lane stores), then write y once per
    #      2x2x2 tap directly into its 16-lane column block of the lane-dense scratch. ----
    g_ref[0:1, :, :, :] = jnp.zeros((1, Hp, Wp, K), jnp.float32)
    g_ref[D:D + 1, :, :, :] = jnp.zeros((1, Hp, Wp, K), jnp.float32)
    g_ref[:, 0:1, :, :] = jnp.zeros((Dp, 1, Wp, K), jnp.float32)
    g_ref[:, H:H + 1, :, :] = jnp.zeros((Dp, 1, Wp, K), jnp.float32)
    g_ref[:, :, 0:1, :] = jnp.zeros((Dp, Hp, 1, K), jnp.float32)
    g_ref[:, :, W:W + 1, :] = jnp.zeros((Dp, Hp, 1, K), jnp.float32)
    for nd in (0, 1):
        for nh in (0, 1):
            for nw in (0, 1):
                q = nd * 4 + nh * 2 + nw
                a0, b0, c0 = 1 - nd, 1 - nh, 1 - nw
                g_ref[a0:a0 + D, b0:b0 + H, c0:c0 + W, q * Ci:(q + 1) * Ci] = y

    # ---- One fused MXU contraction (K = 128).  Emitted as two row-half matmuls whose results
    #      are lane-concatenated, so the output store is a dense, unmasked 128-lane store. ----
    g = g_ref[...].reshape(Mp, K)
    half = Mp // 2
    wb = wbig_ref[...]
    lo = jnp.dot(g[:half, :], wb, preferred_element_type=jnp.float32)   # (Mp//2, 8*Co)
    hi = jnp.dot(g[half:, :], wb, preferred_element_type=jnp.float32)   # (Mp//2, 8*Co)
    o_ref[...] = jnp.concatenate([lo, hi], axis=1)                      # (Mp//2, 2*8*Co)


def build_wbig(w_t):
    """Scatter ConvTranspose3d weights (Ci, Co, 3, 3, 3) into the fused (8*Ci, 8*Co) matrix.

    Row block q=(nd,nh,nw) is the 2x2x2 input-neighbourhood offset; column block p=(pd,ph,pw)
    is the output parity. Per spatial dim: neighbourhood n=1 pairs with tap k=p (reads x[a]);
    n=0 pairs with k=2 (reads x[a-1]), which only exists for even parity p=0. Invalid (n, p)
    combinations stay zero (27 of 64 blocks are populated; the zeros are free on the MXU)."""
    Ci, Co = w_t.shape[0], w_t.shape[1]
    wb = jnp.zeros((8 * Ci, 8 * Co), jnp.float32)
    for nd in (0, 1):
        for nh in (0, 1):
            for nw in (0, 1):
                q = nd * 4 + nh * 2 + nw
                for pd in (0, 1):
                    for ph in (0, 1):
                        for pw in (0, 1):
                            if (nd == 0 and pd == 1) or (nh == 0 and ph == 1) or (nw == 0 and pw == 1):
                                continue
                            p = pd * 4 + ph * 2 + pw
                            kd = pd if nd == 1 else 2
                            kh = ph if nh == 1 else 2
                            kw = pw if nw == 1 else 2
                            wb = wb.at[q * Ci:(q + 1) * Ci, p * Co:(p + 1) * Co].set(
                                w_t[:, :, kd, kh, kw])
    return wb


def upsampling_pallas(x_ncdhw, w_t, gamma, beta):
    """x: (N, Ci, D, H, W) f32; w_t: (Ci, Co, 3, 3, 3) (PyTorch ConvTranspose3d layout);
    gamma/beta: (Ci,). Returns (N, Co, 2D+1, 2H+1, 2W+1)."""
    N, Ci, D, H, W = x_ncdhw.shape
    Co = w_t.shape[1]
    Dp, Hp, Wp = D + 1, H + 1, W + 1
    Mp = Dp * Hp * Wp
    assert Mp % 2 == 0, "lane-dense output packing needs an even G row count (use odd W so Wp is even)"
    Mp2 = Mp // 2

    x = jnp.transpose(x_ncdhw, (0, 2, 3, 4, 1))     # NCDHW -> NDHWC
    wbig = build_wbig(w_t)                          # (8*Ci, 8*Co)

    out = pl.pallas_call(
        upsampling_kernel,
        out_shape=jax.ShapeDtypeStruct((N, Mp2, 2 * 8 * Co), jnp.float32),
        grid_spec=pltpu.PrefetchScalarGridSpec(
            num_scalar_prefetch=0,
            grid=(N,),
            in_specs=[
                pl.BlockSpec((None, D, H, W, Ci), lambda n: (n, 0, 0, 0, 0)),
                pl.BlockSpec((8 * Ci, 8 * Co), lambda n: (0, 0)),
                pl.BlockSpec((1, Ci), lambda n: (0, 0)),
                pl.BlockSpec((1, Ci), lambda n: (0, 0)),
            ],
            out_specs=pl.BlockSpec((None, Mp2, 2 * 8 * Co), lambda n: (n, 0, 0)),
            scratch_shapes=[pltpu.VMEM((Dp, Hp, Wp, 8 * Ci), jnp.float32)],
        ),
        compiler_params=pltpu.CompilerParams(
            dimension_semantics=("parallel",),
            vmem_limit_bytes=64 * 1024 * 1024,
        ),
    )(x, wbig, gamma.reshape(1, Ci), beta.reshape(1, Ci))

    # Un-pack the lane-dense kernel output back to NCDHW (cheap wrapper-side layout plumbing):
    # lanes = (row-half s, parity p, co); G rows m = s*Mp2 + r = a*Hp*Wp + b*Wp + c.
    out = out.reshape(N, Mp2, 2, 8, Co)
    out = jnp.transpose(out, (0, 2, 1, 3, 4))               # (N, s, r, p, co)
    out = out.reshape(N, Mp, 8, Co)                         # m = s*Mp2 + r
    out = out.reshape(N, Dp, Hp, Wp, 2, 2, 2, Co)
    out = jnp.transpose(out, (0, 7, 1, 4, 2, 5, 3, 6))      # (n, co, a, pd, b, ph, c, pw)
    out = out.reshape(N, Co, 2 * Dp, 2 * Hp, 2 * Wp)
    return out[:, :, :2 * D + 1, :2 * H + 1, :2 * W + 1]


def upsampling_reference(x, w_t, gamma, beta):
    """Pure-JAX reference in NCDHW, mirroring PyTorch semantics exactly."""
    N, Ci, D, H, W = x.shape
    Co = w_t.shape[1]
    mean = jnp.mean(x, axis=(2, 3, 4), keepdims=True)
    var = jnp.var(x, axis=(2, 3, 4), keepdims=True)          # biased, like InstanceNorm3d
    y = (x - mean) / jnp.sqrt(var + EPS)
    y = y * gamma.reshape(1, -1, 1, 1, 1) + beta.reshape(1, -1, 1, 1, 1)
    out = jnp.zeros((N, Co, 2 * D + 1, 2 * H + 1, 2 * W + 1), jnp.float32)
    for kd in range(3):
        for kh in range(3):
            for kw in range(3):
                t = jnp.einsum('nidhw,io->nodhw', y, w_t[:, :, kd, kh, kw],
                               precision=jax.lax.Precision.HIGHEST)
                out = out.at[:, :, kd:kd + 2 * D:2, kh:kh + 2 * H:2, kw:kw + 2 * W:2].add(t)
    return out


if __name__ == "__main__":
    N, Ci, Co = 2, 16, 8            # module defaults: in_channels=16, out_channels=8
    D, H, W = 3, 5, 7               # small spatial; W=7 so Wp=8 keeps G sublane-aligned / Mp even

    key = jax.random.PRNGKey(0)
    kx, kw, kg, kb = jax.random.split(key, 4)
    x = jax.random.normal(kx, (N, Ci, D, H, W), jnp.float32)
    std = (2.0 / (Ci * 27)) ** 0.5
    # ConvTranspose3d weight layout: (in_channels, out_channels, kD, kH, kW), bias=False
    w_t = std * jax.random.normal(kw, (Ci, Co, 3, 3, 3), jnp.float32)
    # InstanceNorm3d affine params (default init is ones/zeros; perturb to exercise the path)
    gamma = 1.0 + 0.1 * jax.random.normal(kg, (Ci,), jnp.float32)
    beta = 0.1 * jax.random.normal(kb, (Ci,), jnp.float32)

    out = upsampling_pallas(x, w_t, gamma, beta)
    out = jax.block_until_ready(out)

    ref = upsampling_reference(x, w_t, gamma, beta)
    assert out.shape == (N, Co, 2 * D + 1, 2 * H + 1, 2 * W + 1), out.shape
    max_err = float(jnp.max(jnp.abs(out - ref)))
    assert jnp.allclose(out, ref, rtol=2e-4, atol=2e-4), max_err
    print("KERNEL_OK")
</pallas_src>

<mosaic_0001>
module attributes {stable_mosaic.version = 11 : i64} {
  func.func @upsampling_kernel(%arg0: i32, %arg1: memref<1x3x5x7x16xf32, #tpu.memory_space<vmem>>, %arg2: memref<128x64xf32, #tpu.memory_space<vmem>>, %arg3: memref<1x16xf32, #tpu.memory_space<vmem>>, %arg4: memref<1x16xf32, #tpu.memory_space<vmem>>, %arg5: memref<1x96x128xf32, #tpu.memory_space<vmem>>, %arg6: memref<4x6x8x128xf32, #tpu.memory_space<vmem>>) attributes {dimension_semantics = [#tpu.dimension_semantics<parallel>], iteration_bounds = array<i64: 2>, scalar_prefetch = 0 : i64, scratch_operands = 1 : i64, tpu.core_type = #tpu.core_type<tc>, window_params = [{transform_indices = @transform_0, window_bounds = array<i64: 1, 3, 5, 7, 16>}, {pipeline_mode = #tpu.pipeline_mode<synchronous>, transform_indices = @transform_1, window_bounds = array<i64: 128, 64>}, {pipeline_mode = #tpu.pipeline_mode<synchronous>, transform_indices = @transform_2, window_bounds = array<i64: 1, 16>}, {pipeline_mode = #tpu.pipeline_mode<synchronous>, transform_indices = @transform_3, window_bounds = array<i64: 1, 16>}, {transform_indices = @transform_4, window_bounds = array<i64: 1, 96, 128>}]} {
    %c0 = arith.constant 0 : index
    %c0_0 = arith.constant 0 : index
    %c0_1 = arith.constant 0 : index
    %c0_2 = arith.constant 0 : index
    %c0_3 = arith.constant 0 : index
    %0 = vector.load %arg1[%c0, %c0_0, %c0_1, %c0_2, %c0_3] : memref<1x3x5x7x16xf32, #tpu.memory_space<vmem>>, vector<1x3x5x7x16xf32>
    %1 = vector.shape_cast %0 : vector<1x3x5x7x16xf32> to vector<3x5x7x16xf32>
    %cst = arith.constant dense<0.000000e+00> : vector<16xf32>
    %2 = vector.multi_reduction <add>, %1, %cst [0, 1, 2] : vector<3x5x7x16xf32> to vector<16xf32>
    %3 = vector.shape_cast %2 : vector<16xf32> to vector<1x1x1x16xf32>
    %cst_4 = arith.constant 9.523810e-03 : f32
    %4 = vector.broadcast %cst_4 : f32 to vector<1x1x1x16xf32>
    %5 = arith.mulf %3, %4 : vector<1x1x1x16xf32>
    %6 = vector.broadcast %5 : vector<1x1x1x16xf32> to vector<3x5x7x16xf32>
    %7 = arith.subf %1, %6 : vector<3x5x7x16xf32>
    %8 = arith.mulf %7, %7 : vector<3x5x7x16xf32>
    %cst_5 = arith.constant dense<0.000000e+00> : vector<16xf32>
    %9 = vector.multi_reduction <add>, %8, %cst_5 [0, 1, 2] : vector<3x5x7x16xf32> to vector<16xf32>
    %10 = vector.shape_cast %9 : vector<16xf32> to vector<1x1x1x16xf32>
    %cst_6 = arith.constant 9.523810e-03 : f32
    %11 = vector.broadcast %cst_6 : f32 to vector<1x1x1x16xf32>
    %12 = arith.mulf %10, %11 : vector<1x1x1x16xf32>
    %c0_7 = arith.constant 0 : index
    %c0_8 = arith.constant 0 : index
    %13 = vector.load %arg3[%c0_7, %c0_8] : memref<1x16xf32, #tpu.memory_space<vmem>>, vector<1x16xf32>
    %14 = vector.shape_cast %13 : vector<1x16xf32> to vector<1x1x1x16xf32>
    %cst_9 = arith.constant 9.99999974E-6 : f32
    %15 = vector.broadcast %cst_9 : f32 to vector<1x1x1x16xf32>
    %16 = arith.addf %12, %15 : vector<1x1x1x16xf32>
    %17 = math.rsqrt %16 : vector<1x1x1x16xf32>
    %18 = arith.mulf %14, %17 : vector<1x1x1x16xf32>
    %19 = vector.broadcast %18 : vector<1x1x1x16xf32> to vector<3x5x7x16xf32>
    %20 = arith.mulf %7, %19 : vector<3x5x7x16xf32>
    %c0_10 = arith.constant 0 : index
    %c0_11 = arith.constant 0 : index
    %21 = vector.load %arg4[%c0_10, %c0_11] : memref<1x16xf32, #tpu.memory_space<vmem>>, vector<1x16xf32>
    %22 = vector.shape_cast %21 : vector<1x16xf32> to vector<1x1x1x16xf32>
    %23 = vector.broadcast %22 : vector<1x1x1x16xf32> to vector<3x5x7x16xf32>
    %24 = arith.addf %20, %23 : vector<3x5x7x16xf32>
    %cst_12 = arith.constant 0.000000e+00 : f32
    %25 = vector.broadcast %cst_12 : f32 to vector<1x6x8x128xf32>
    %c0_13 = arith.constant 0 : index
    %c0_14 = arith.constant 0 : index
    %c0_15 = arith.constant 0 : index
    %c0_16 = arith.constant 0 : index
    %26 = vector.load %arg6[%c0_13, %c0_14, %c0_15, %c0_16] : memref<4x6x8x128xf32, #tpu.memory_space<vmem>>, vector<1x6x8x128xf32>
    tpu.vector_store %arg6[%c0_13, %c0_14, %c0_15, %c0_16], %25 {strides = array<i32>} : memref<4x6x8x128xf32, #tpu.memory_space<vmem>>, vector<1x6x8x128xf32>,
    %cst_17 = arith.constant 0.000000e+00 : f32
    %27 = vector.broadcast %cst_17 : f32 to vector<1x6x8x128xf32>
    %c3 = arith.constant 3 : index
    %c0_18 = arith.constant 0 : index
    %c0_19 = arith.constant 0 : index
    %c0_20 = arith.constant 0 : index
    %28 = vector.load %arg6[%c3, %c0_18, %c0_19, %c0_20] : memref<4x6x8x128xf32, #tpu.memory_space<vmem>>, vector<1x6x8x128xf32>
    tpu.vector_store %arg6[%c3, %c0_18, %c0_19, %c0_20], %27 {strides = array<i32>} : memref<4x6x8x128xf32, #tpu.memory_space<vmem>>, vector<1x6x8x128xf32>,
    %cst_21 = arith.constant 0.000000e+00 : f32
    %29 = vector.broadcast %cst_21 : f32 to vector<4x1x8x128xf32>
    %c0_22 = arith.constant 0 : index
    %c0_23 = arith.constant 0 : index
    %c0_24 = arith.constant 0 : index
    %c0_25 = arith.constant 0 : index
    %30 = vector.load %arg6[%c0_22, %c0_23, %c0_24, %c0_25] : memref<4x6x8x128xf32, #tpu.memory_space<vmem>>, vector<4x1x8x128xf32>
    tpu.vector_store %arg6[%c0_22, %c0_23, %c0_24, %c0_25], %29 {strides = array<i32>} : memref<4x6x8x128xf32, #tpu.memory_space<vmem>>, vector<4x1x8x128xf32>,
    %cst_26 = arith.constant 0.000000e+00 : f32
    %31 = vector.broadcast %cst_26 : f32 to vector<4x1x8x128xf32>
    %c0_27 = arith.constant 0 : index
    %c5 = arith.constant 5 : index
    %c0_28 = arith.constant 0 : index
    %c0_29 = arith.constant 0 : index
    %32 = vector.load %arg6[%c0_27, %c5, %c0_28, %c0_29] : memref<4x6x8x128xf32, #tpu.memory_space<vmem>>, vector<4x1x8x128xf32>
    tpu.vector_store %arg6[%c0_27, %c5, %c0_28, %c0_29], %31 {strides = array<i32>} : memref<4x6x8x128xf32, #tpu.memory_space<vmem>>, vector<4x1x8x128xf32>,
    %cst_30 = arith.constant 0.000000e+00 : f32
    %33 = vector.broadcast %cst_30 : f32 to vector<4x6x1x128xf32>
    %c0_31 = arith.constant 0 : index
    %c0_32 = arith.constant 0 : index
    %c0_33 = arith.constant 0 : index
    %c0_34 = arith.constant 0 : index
    %34 = vector.load %arg6[%c0_31, %c0_32, %c0_33, %c0_34] : memref<4x6x8x128xf32, #tpu.memory_space<vmem>>, vector<4x6x1x128xf32>
    tpu.vector_store %arg6[%c0_31, %c0_32, %c0_33, %c0_34], %33 {strides = array<i32>} : memref<4x6x8x128xf32, #tpu.memory_space<vmem>>, vector<4x6x1x128xf32>,
    %cst_35 = arith.constant 0.000000e+00 : f32
    %35 = vector.broadcast %cst_35 : f32 to vector<4x6x1x128xf32>
    %c0_36 = arith.constant 0 : index
    %c0_37 = arith.constant 0 : index
    %c7 = arith.constant 7 : index
    %c0_38 = arith.constant 0 : index
    %36 = vector.load %arg6[%c0_36, %c0_37, %c7, %c0_38] : memref<4x6x8x128xf32, #tpu.memory_space<vmem>>, vector<4x6x1x128xf32>
    tpu.vector_store %arg6[%c0_36, %c0_37, %c7, %c0_38], %35 {strides = array<i32>} : memref<4x6x8x128xf32, #tpu.memory_space<vmem>>, vector<4x6x1x128xf32>,
    %c1 = arith.constant 1 : index
    %c1_39 = arith.constant 1 : index
    %c1_40 = arith.constant 1 : index
    %c0_41 = arith.constant 0 : index
    %37 = vector.load %arg6[%c1, %c1_39, %c1_40, %c0_41] : memref<4x6x8x128xf32, #tpu.memory_space<vmem>>, vector<3x5x7x16xf32>
    tpu.vector_store %arg6[%c1, %c1_39, %c1_40, %c0_41], %24 {strides = array<i32>} : memref<4x6x8x128xf32, #tpu.memory_space<vmem>>, vector<3x5x7x16xf32>,
    %c1_42 = arith.constant 1 : index
    %c1_43 = arith.constant 1 : index
    %c0_44 = arith.constant 0 : index
    %c16 = arith.constant 16 : index
    %38 = vector.load %arg6[%c1_42, %c1_43, %c0_44, %c16] : memref<4x6x8x128xf32, #tpu.memory_space<vmem>>, vector<3x5x7x16xf32>
    tpu.vector_store %arg6[%c1_42, %c1_43, %c0_44, %c16], %24 {strides = array<i32>} : memref<4x6x8x128xf32, #tpu.memory_space<vmem>>, vector<3x5x7x16xf32>,
    %c1_45 = arith.constant 1 : index
    %c0_46 = arith.constant 0 : index
    %c1_47 = arith.constant 1 : index
    %c32 = arith.constant 32 : index
    %39 = vector.load %arg6[%c1_45, %c0_46, %c1_47, %c32] : memref<4x6x8x128xf32, #tpu.memory_space<vmem>>, vector<3x5x7x16xf32>
    tpu.vector_store %arg6[%c1_45, %c0_46, %c1_47, %c32], %24 {strides = array<i32>} : memref<4x6x8x128xf32, #tpu.memory_space<vmem>>, vector<3x5x7x16xf32>,
    %c1_48 = arith.constant 1 : index
    %c0_49 = arith.constant 0 : index
    %c0_50 = arith.constant 0 : index
    %c48 = arith.constant 48 : index
    %40 = vector.load %arg6[%c1_48, %c0_49, %c0_50, %c48] : memref<4x6x8x128xf32, #tpu.memory_space<vmem>>, vector<3x5x7x16xf32>
    tpu.vector_store %arg6[%c1_48, %c0_49, %c0_50, %c48], %24 {strides = array<i32>} : memref<4x6x8x128xf32, #tpu.memory_space<vmem>>, vector<3x5x7x16xf32>,
    %c0_51 = arith.constant 0 : index
    %c1_52 = arith.constant 1 : index
    %c1_53 = arith.constant 1 : index
    %c64 = arith.constant 64 : index
    %41 = vector.load %arg6[%c0_51, %c1_52, %c1_53, %c64] : memref<4x6x8x128xf32, #tpu.memory_space<vmem>>, vector<3x5x7x16xf32>
    tpu.vector_store %arg6[%c0_51, %c1_52, %c1_53, %c64], %24 {strides = array<i32>} : memref<4x6x8x128xf32, #tpu.memory_space<vmem>>, vector<3x5x7x16xf32>,
    %c0_54 = arith.constant 0 : index
    %c1_55 = arith.constant 1 : index
    %c0_56 = arith.constant 0 : index
    %c80 = arith.constant 80 : index
    %42 = vector.load %arg6[%c0_54, %c1_55, %c0_56, %c80] : memref<4x6x8x128xf32, #tpu.memory_space<vmem>>, vector<3x5x7x16xf32>
    tpu.vector_store %arg6[%c0_54, %c1_55, %c0_56, %c80], %24 {strides = array<i32>} : memref<4x6x8x128xf32, #tpu.memory_space<vmem>>, vector<3x5x7x16xf32>,
    %c0_57 = arith.constant 0 : index
    %c0_58 = arith.constant 0 : index
    %c1_59 = arith.constant 1 : index
    %c96 = arith.constant 96 : index
    %43 = vector.load %arg6[%c0_57, %c0_58, %c1_59, %c96] : memref<4x6x8x128xf32, #tpu.memory_space<vmem>>, vector<3x5x7x16xf32>
    tpu.vector_store %arg6[%c0_57, %c0_58, %c1_59, %c96], %24 {strides = array<i32>} : memref<4x6x8x128xf32, #tpu.memory_space<vmem>>, vector<3x5x7x16xf32>,
    %c0_60 = arith.constant 0 : index
    %c0_61 = arith.constant 0 : index
    %c0_62 = arith.constant 0 : index
    %c112 = arith.constant 112 : index
    %44 = vector.load %arg6[%c0_60, %c0_61, %c0_62, %c112] : memref<4x6x8x128xf32, #tpu.memory_space<vmem>>, vector<3x5x7x16xf32>
    tpu.vector_store %arg6[%c0_60, %c0_61, %c0_62, %c112], %24 {strides = array<i32>} : memref<4x6x8x128xf32, #tpu.memory_space<vmem>>, vector<3x5x7x16xf32>,
    %c0_63 = arith.constant 0 : index
    %c0_64 = arith.constant 0 : index
    %c0_65 = arith.constant 0 : index
    %c0_66 = arith.constant 0 : index
    %45 = vector.load %arg6[%c0_63, %c0_64, %c0_65, %c0_66] : memref<4x6x8x128xf32, #tpu.memory_space<vmem>>, vector<4x6x8x128xf32>
    %46 = vector.shape_cast %45 : vector<4x6x8x128xf32> to vector<192x128xf32>
    %c0_67 = arith.constant 0 : index
    %c0_68 = arith.constant 0 : index
    %47 = vector.load %arg2[%c0_67, %c0_68] : memref<128x64xf32, #tpu.memory_space<vmem>>, vector<128x64xf32>
    %48 = vector.extract_strided_slice %46 {offsets = [0, 0], sizes = [96, 128], strides = [1, 1]} : vector<192x128xf32> to vector<96x128xf32>
    %cst_69 = arith.constant dense<0.000000e+00> : vector<96x64xf32>
    %49 = tpu.matmul %48, %47, %cst_69 {dimension_numbers = #tpu.dot_dimension_numbers<[1], [0], [0], [1], [0, 0, 1, 1], [], []>} : vector<96x128xf32>, vector<128x64xf32>, vector<96x64xf32> -> vector<96x64xf32>
    %50 = vector.extract_strided_slice %46 {offsets = [96, 0], sizes = [96, 128], strides = [1, 1]} : vector<192x128xf32> to vector<96x128xf32>
    %cst_70 = arith.constant dense<0.000000e+00> : vector<96x64xf32>
    %51 = tpu.matmul %50, %47, %cst_70 {dimension_numbers = #tpu.dot_dimension_numbers<[1], [0], [0], [1], [0, 0, 1, 1], [], []>} : vector<96x128xf32>, vector<128x64xf32>, vector<96x64xf32> -> vector<96x64xf32>
    %52 = tpu.concatenate %49, %51 in 1 : vector<96x64xf32>, vector<96x64xf32> -> vector<96x128xf32>
    %c0_71 = arith.constant 0 : index
    %c0_72 = arith.constant 0 : index
    %c0_73 = arith.constant 0 : index
    %53 = vector.load %arg5[%c0_71, %c0_72, %c0_73] : memref<1x96x128xf32, #tpu.memory_space<vmem>>, vector<1x96x128xf32>
    %54 = vector.shape_cast %53 : vector<1x96x128xf32> to vector<96x128xf32>
    %55 = vector.shape_cast %52 : vector<96x128xf32> to vector<1x96x128xf32>
    tpu.vector_store %arg5[%c0_71, %c0_72, %c0_73], %55 {strides = array<i32>} : memref<1x96x128xf32, #tpu.memory_space<vmem>>, vector<1x96x128xf32>,
    return
  }
  func.func @transform_0(%arg0: i32) -> (i32, i32, i32, i32, i32) {
    %c0_i32 = arith.constant 0 : i32
    %c0_i32_0 = arith.constant 0 : i32
    %c0_i32_1 = arith.constant 0 : i32
    %c0_i32_2 = arith.constant 0 : i32
    %c0_i32_3 = arith.constant 0 : i32
    return %arg0, %c0_i32, %c0_i32_0, %c0_i32_1, %c0_i32_2 : i32, i32, i32, i32, i32
  }
  func.func @transform_1(%arg0: i32) -> (i32, i32) {
    %c0_i32 = arith.constant 0 : i32
    %c0_i32_0 = arith.constant 0 : i32
    %c0_i32_1 = arith.constant 0 : i32
    return %c0_i32, %c0_i32_0 : i32, i32
  }
  func.func @transform_2(%arg0: i32) -> (i32, i32) {
    %c0_i32 = arith.constant 0 : i32
    %c0_i32_0 = arith.constant 0 : i32
    %c0_i32_1 = arith.constant 0 : i32
    return %c0_i32, %c0_i32_0 : i32, i32
  }
  func.func @transform_3(%arg0: i32) -> (i32, i32) {
    %c0_i32 = arith.constant 0 : i32
    %c0_i32_0 = arith.constant 0 : i32
    %c0_i32_1 = arith.constant 0 : i32
    return %c0_i32, %c0_i32_0 : i32, i32
  }
  func.func @transform_4(%arg0: i32) -> (i32, i32, i32) {
    %c0_i32 = arith.constant 0 : i32
    %c0_i32_0 = arith.constant 0 : i32
    %c0_i32_1 = arith.constant 0 : i32
    return %arg0, %c0_i32, %c0_i32_0 : i32, i32, i32
  }
}

</mosaic_0001>

<llo_original>
// kernel: tpu_custom_call.1
$region0: #{tpu_custom_call.1}
  #allocation0 [shape = 'u32[]', space=smem, size = 0x4, offset = 0x4, fixed_abs, tag = 'smem constant byte address 0x4 - core index']
  #allocation1 [shape = 'u32[144,128]{1,0:T(1,128)}', space=vmem, size = 0x12000, scoped, tag = 'internal scratch']
  #allocation2 [shape = 'f32[4,6,8,128]{3,2,1,0:T(8,128)}', space=vmem, size = 0x18000, scoped, tag = 'scratch operand']
  %s0 = inlined_call_operand.vmem [shape: f32[2,3,5,7,16], index: 0, kind: input, shape index: {}]
  %s1 = inlined_call_operand.vmem [shape: f32[128,64], index: 1, kind: input, shape index: {}]
  %s2 = inlined_call_operand.vmem [shape: f32[1,16], index: 2, kind: input, shape index: {}]
  %s3 = inlined_call_operand.vmem [shape: f32[1,16], index: 3, kind: input, shape index: {}]
  %s4 = inlined_call_operand.hbm [shape: f32[2,96,128], index: 4, kind: output, shape index: {}]
  %s5 = sld [smem:[#allocation0]]
  $region49: #{tpu_custom_call.1} parent=0
    _
  %s7 = ssub.s32 1, %s5
  %s8 = scalar_select 0, %s7, %s5
  $region1: #{tpu_custom_call.1} parent=0
    #allocation3 [shape = 'u8[98304]{0}', space=vmem, size = 0x18000, scoped, tag = 'output window, operand 0']
    #allocation4 [shape = 's32[2]{0}', space=sflag, size = 0x8, scoped, tag = 'scoped memory for tpu_custom_call.1']
    %9 = vsyncpa [#allocation4], 0
    %s10 = scalar_lea.sflag [#allocation4], 1
    %11 = vsyncpa %s10, 0
    loop: start=0, step=1, limit=4
    $region2: #{tpu_custom_call.1} parent=1 // loop_pre_header
      _
    $region3: #{tpu_custom_call.1} parent=1 // loop_header
      %s13 = sphi 0, %s17
      %p14 = scmp.ge.s32.totalorder %s13, 4
      %s23 = sphi 0, %s25
      %s26 = sphi 0, %s23
      %s27 = sphi 0, %s26
      %s43 = sphi 0, %s27
      %s47 = sphi 0, %s47
      %s49 = sphi 0, %s47
      %s50 = sphi 0, %s49
      %s64 = sphi 0, %s50
      %s68 = sphi 0, %s68
      %s70 = sphi 0, %s68
      %s71 = sphi 0, %s70
      %s85 = sphi 0, %s71
      %s89 = sphi 0, %s89
      %s91 = sphi 0, %s89
      %s92 = sphi 0, %s91
      %s106 = sphi 0, %s92
      %s112 = sphi 0, %s114
      %s115 = sphi 0, %s112
      %s116 = sphi 0, %s115
      %s132 = sphi 0, %s116
    $region4: #{tpu_custom_call.1} parent=1 // loop_header_branch
      %16 = sbr.rel (%p14) target = $region8
    $region5: #{tpu_custom_call.1} parent=1 // loop_body
      %s18 = ssub.s32 %s13, 1
      %s19 = ssub.s32 %s13, 2
      %s20 = sadd.s32 %s13, 1
      %s21 = ssub.s32 %s13, %s20
      %p22 = scmp.eq.s32.totalorder %s21, 0
      %s24 = sadd.s32 %s23, 1
      %s25 = scalar_select %p22, %s23, %s24
      %p28 = pneg %p22
      %p29 = scmp.eq.s32.totalorder %s13, 1
      %p30 = por %p28, %p29
      %p31 = scmp.ne.s32.totalorder %s23, %s26
      %p32 = scmp.eq.s32.totalorder %s13, 0
      %p33 = por %p31, %p32
      %p34 = scmp.ne.s32.totalorder %s23, %s26
      %p35 = scmp.eq.s32.totalorder %s18, 1
      %p36 = por %p34, %p35
      %p37 = scmp.ne.s32.totalorder %s26, %s27
      %p38 = scmp.eq.s32.totalorder %s18, 0
      %p39 = por %p37, %p38
      %p40 = scmp.ne.s32.totalorder %s26, %s27
      %p41 = scmp.eq.s32.totalorder %s19, 1
      %p42 = por %p40, %p41
      %p44 = scmp.ne.s32.totalorder %s27, %s43
      %p45 = scmp.eq.s32.totalorder %s19, 0
      %p46 = por %p44, %p45
      %s48 = sadd.s32 %s47, 1
      %p51 = scmp.eq.s32.totalorder %s13, 1
      %p52 = scmp.ne.s32.totalorder %s47, %s49
      %p53 = scmp.eq.s32.totalorder %s13, 0
      %p54 = por %p52, %p53
      %p55 = scmp.ne.s32.totalorder %s47, %s49
      %p56 = scmp.eq.s32.totalorder %s18, 1
      %p57 = por %p55, %p56
      %p58 = scmp.ne.s32.totalorder %s49, %s50
      %p59 = scmp.eq.s32.totalorder %s18, 0
      %p60 = por %p58, %p59
      %p61 = scmp.ne.s32.totalorder %s49, %s50
      %p62 = scmp.eq.s32.totalorder %s19, 1
      %p63 = por %p61, %p62
      %p65 = scmp.ne.s32.totalorder %s50, %s64
      %p66 = scmp.eq.s32.totalorder %s19, 0
      %p67 = por %p65, %p66
      %s69 = sadd.s32 %s68, 1
      %p72 = scmp.eq.s32.totalorder %s13, 1
      %p73 = scmp.ne.s32.totalorder %s68, %s70
      %p74 = scmp.eq.s32.totalorder %s13, 0
      %p75 = por %p73, %p74
      %p76 = scmp.ne.s32.totalorder %s68, %s70
      %p77 = scmp.eq.s32.totalorder %s18, 1
      %p78 = por %p76, %p77
      %p79 = scmp.ne.s32.totalorder %s70, %s71
      %p80 = scmp.eq.s32.totalorder %s18, 0
      %p81 = por %p79, %p80
      %p82 = scmp.ne.s32.totalorder %s70, %s71
      %p83 = scmp.eq.s32.totalorder %s19, 1
      %p84 = por %p82, %p83
      %p86 = scmp.ne.s32.totalorder %s71, %s85
      %p87 = scmp.eq.s32.totalorder %s19, 0
      %p88 = por %p86, %p87
      %s90 = sadd.s32 %s89, 1
      %p93 = scmp.eq.s32.totalorder %s13, 1
      %p94 = scmp.ne.s32.totalorder %s89, %s91
      %p95 = scmp.eq.s32.totalorder %s13, 0
      %p96 = por %p94, %p95
      %p97 = scmp.ne.s32.totalorder %s89, %s91
      %p98 = scmp.eq.s32.totalorder %s18, 1
      %p99 = por %p97, %p98
      %p100 = scmp.ne.s32.totalorder %s91, %s92
      %p101 = scmp.eq.s32.totalorder %s18, 0
      %p102 = por %p100, %p101
      %p103 = scmp.ne.s32.totalorder %s91, %s92
      %p104 = scmp.eq.s32.totalorder %s19, 1
      %p105 = por %p103, %p104
      %p107 = scmp.ne.s32.totalorder %s92, %s106
      %p108 = scmp.eq.s32.totalorder %s19, 0
      %p109 = por %p107, %p108
      %s110 = ssub.s32 %s13, %s20
      %p111 = scmp.eq.s32.totalorder %s110, 0
      %s113 = sadd.s32 %s112, 1
      %s114 = scalar_select %p111, %s112, %s113
      %p117 = pneg %p111
      %p118 = scmp.eq.s32.totalorder %s13, 1
      %p119 = por %p117, %p118
      %p120 = scmp.ne.s32.totalorder %s112, %s115
      %p121 = scmp.eq.s32.totalorder %s13, 0
      %p122 = por %p120, %p121
      %p123 = scmp.ne.s32.totalorder %s112, %s115
      %p124 = scmp.eq.s32.totalorder %s18, 1
      %p125 = por %p123, %p124
      %p126 = scmp.ne.s32.totalorder %s115, %s116
      %p127 = scmp.eq.s32.totalorder %s18, 0
      %p128 = por %p126, %p127
      %p129 = scmp.ne.s32.totalorder %s115, %s116
      %p130 = scmp.eq.s32.totalorder %s19, 1
      %p131 = por %p129, %p130
      %p133 = scmp.ne.s32.totalorder %s116, %s132
      %p134 = scmp.eq.s32.totalorder %s19, 0
      %p135 = por %p133, %p134
      %p136 = scmp.le.s32.totalorder 1, %s13
      %p137 = scmp.lt.s32.totalorder %s13, 3
      %p138 = pnand %p136, %p137
      %p139 = pneg %p138
      // Predicated region
      $region9: #{tpu_custom_call.1} parent=5 // pred_check
        _
      $region10: #{tpu_custom_call.1} parent=5 // pred_check_branch
        %141 = sbr.rel (%p138) target = $region12
      $region11: #{tpu_custom_call.1} parent=5 // pred_region
        %s142 = ssub.s32 %s13, 1
        // Predicated region
        $region13: #{tpu_custom_call.1} parent=11 // pred_check
          %p143 = pneg %p60
        $region14: #{tpu_custom_call.1} parent=11 // pred_check_branch
          %145 = sbr.rel (%p143) target = $region16
        $region15: #{tpu_custom_call.1} parent=11 // pred_region
          _
        $region16: #{tpu_custom_call.1} parent=11 // pred_fallthru
          _
        // Predicated region
        $region17: #{tpu_custom_call.1} parent=11 // pred_check
          %p146 = pneg %p81
        $region18: #{tpu_custom_call.1} parent=11 // pred_check_branch
          %148 = sbr.rel (%p146) target = $region20
        $region19: #{tpu_custom_call.1} parent=11 // pred_region
          _
        $region20: #{tpu_custom_call.1} parent=11 // pred_fallthru
          _
        // Predicated region
        $region21: #{tpu_custom_call.1} parent=11 // pred_check
          %p149 = pneg %p102
        $region22: #{tpu_custom_call.1} parent=11 // pred_check_branch
          %151 = sbr.rel (%p149) target = $region24
        $region23: #{tpu_custom_call.1} parent=11 // pred_region
          _
        $region24: #{tpu_custom_call.1} parent=11 // pred_fallthru
          _
      $region12: #{tpu_custom_call.1} parent=5 // pred_fallthru
        _
      %p152 = scmp.lt.s32.totalorder %s13, 2
      // Predicated region
      $region25: #{tpu_custom_call.1} parent=5 // pred_check
        %p153 = pneg %p152
      $region26: #{tpu_custom_call.1} parent=5 // pred_check_branch
        %155 = sbr.rel (%p153) target = $region28
      $region27: #{tpu_custom_call.1} parent=5 // pred_region
        // Predicated region
        $region29: #{tpu_custom_call.1} parent=27 // pred_check
          %p156 = pneg %p33
        $region30: #{tpu_custom_call.1} parent=27 // pred_check_branch
          %158 = sbr.rel (%p156) target = $region32
        $region31: #{tpu_custom_call.1} parent=27 // pred_region
          %p159 = scmp.lt.s32.totalorder %s13, 1
          %s160 = scalar_select %p159, %s13, 1
          %s161 = smul.addr %s160, 15
          %s162 = smul.addr %s161, 8
          %s163 = scalar_lea.vmem %s0, %s162
        $region32: #{tpu_custom_call.1} parent=27 // pred_fallthru
          _
      $region28: #{tpu_custom_call.1} parent=5 // pred_fallthru
        _
      %p164 = scmp.le.s32.totalorder 1, %s13
      %p165 = scmp.lt.s32.totalorder %s13, 3
      %p166 = pnand %p164, %p165
      %p167 = pneg %p166
      // Predicated region
      $region33: #{tpu_custom_call.1} parent=5 // pred_check
        _
      $region34: #{tpu_custom_call.1} parent=5 // pred_check_branch
        %169 = sbr.rel (%p166) target = $region36
      $region35: #{tpu_custom_call.1} parent=5 // pred_region
        %s170 = ssub.s32 %s13, 1
        %p171 = scmp.lt.s32.totalorder %s18, 1
        %s172 = scalar_select %p171, %s18, 1
        %s173 = smul.addr %s172, 15
        %s174 = smul.addr %s173, 8
        %s175 = scalar_lea.vmem %s0, %s174
        %p176 = pneg %p39
        %p177 = pneg %p36
        %p178 = pneg %p60
        %p179 = pneg %p57
        %p180 = pneg %p81
        %p181 = pneg %p78
        %p182 = pneg %p102
        %p183 = pneg %p99
        %p184 = pneg %p128
        %p185 = pneg %p125
        %s186 = sand.u32 %s115, 1
        %s187 = scalar_lea.sflag [#allocation4], %s186
        %s188 = sand.u32 %s115, 1
        %s189 = smul.addr %s188, 96
        %s190 = scalar_lea.vmem [#allocation3], %s189
        %p191 = scmp.lt.s32.totalorder %s18, 1
        %s192 = scalar_select %p191, %s18, 1
        %s193 = smul.addr %s192, 15
        %s194 = smul.addr %s193, 8
        %s195 = scalar_lea.vmem %s0, %s194
        %v196 = vld [vmem:[%s195] sm:$0x7f]
        %v197 = vld [vmem:[%s195 + $0x8] sm:$0x7f]
        %v198 = vld [vmem:[%s195 + $0x10] sm:$0x7f]
        %v199 = vld [vmem:[%s195 + $0x18] sm:$0x7f]
        %v200 = vld [vmem:[%s195 + $0x20] sm:$0x7f]
        %v201 = vld [vmem:[%s195 + $0x28] sm:$0x7f]
        %v202 = vld [vmem:[%s195 + $0x30] sm:$0x7f]
        %v203 = vld [vmem:[%s195 + $0x38] sm:$0x7f]
        %v204 = vld [vmem:[%s195 + $0x40] sm:$0x7f]
        %v205 = vld [vmem:[%s195 + $0x48] sm:$0x7f]
        %v206 = vld [vmem:[%s195 + $0x50] sm:$0x7f]
        %v207 = vld [vmem:[%s195 + $0x58] sm:$0x7f]
        %v208 = vld [vmem:[%s195 + $0x60] sm:$0x7f]
        %v209 = vld [vmem:[%s195 + $0x68] sm:$0x7f]
        %v210 = vld [vmem:[%s195 + $0x70] sm:$0x7f]
        %vm211 = vcmask 129024
        %v212 = vsel %vm211, %v196, 0.0
        %v213 = vsel %vm211, %v197, 0.0
        %v214 = vadd.f32 %v212, %v213
        %v215 = vsel %vm211, %v198, 0.0
        %v216 = vadd.f32 %v214, %v215
        %v217 = vsel %vm211, %v199, 0.0
        %v218 = vadd.f32 %v216, %v217
        %v219 = vsel %vm211, %v200, 0.0
        %v220 = vadd.f32 %v218, %v219
        %v221 = vsel %vm211, %v201, 0.0
        %v222 = vadd.f32 %v220, %v221
        %v223 = vsel %vm211, %v202, 0.0
        %v224 = vadd.f32 %v222, %v223
        %v225 = vsel %vm211, %v203, 0.0
        %v226 = vadd.f32 %v224, %v225
        %v227 = vsel %vm211, %v204, 0.0
        %v228 = vadd.f32 %v226, %v227
        %v229 = vsel %vm211, %v205, 0.0
        %v230 = vadd.f32 %v228, %v229
        %v231 = vsel %vm211, %v206, 0.0
        %v232 = vadd.f32 %v230, %v231
        %v233 = vsel %vm211, %v207, 0.0
        %v234 = vadd.f32 %v232, %v233
        %v235 = vsel %vm211, %v208, 0.0
        %v236 = vadd.f32 %v234, %v235
        %v237 = vsel %vm211, %v209, 0.0
        %v238 = vadd.f32 %v236, %v237
        %v239 = vsel %vm211, %v210, 0.0
        %v240 = vadd.f32 %v238, %v239
        %v241 = vrot.slane %v240, 4
        %v242 = vadd.f32 %v240, %v241
        %v243 = vrot.slane %v242, 2
        %v244 = vadd.f32 %v242, %v243
        %v245 = vrot.slane %v244, 1
        %v246 = vadd.f32 %v244, %v245
        %v247 = vmul.f32 %v246, 0.00952381
        %v248 = vsub.f32 %v196, %v247
        %v249 = vsub.f32 %v197, %v247
        %v250 = vsub.f32 %v198, %v247
        %v251 = vsub.f32 %v199, %v247
        %v252 = vsub.f32 %v200, %v247
        %v253 = vsub.f32 %v201, %v247
        %v254 = vsub.f32 %v202, %v247
        %v255 = vsub.f32 %v203, %v247
        %v256 = vsub.f32 %v204, %v247
        %v257 = vsub.f32 %v205, %v247
        %v258 = vsub.f32 %v206, %v247
        %v259 = vsub.f32 %v207, %v247
        %v260 = vsub.f32 %v208, %v247
        %v261 = vsub.f32 %v209, %v247
        %v262 = vsub.f32 %v210, %v247
        %v263 = vmul.f32 %v248, %v248
        %v264 = vmul.f32 %v249, %v249
        %v265 = vmul.f32 %v250, %v250
        %v266 = vmul.f32 %v251, %v251
        %v267 = vmul.f32 %v252, %v252
        %v268 = vmul.f32 %v253, %v253
        %v269 = vmul.f32 %v254, %v254
        %v270 = vmul.f32 %v255, %v255
        %v271 = vmul.f32 %v256, %v256
        %v272 = vmul.f32 %v257, %v257
        %v273 = vmul.f32 %v258, %v258
        %v274 = vmul.f32 %v259, %v259
        %v275 = vmul.f32 %v260, %v260
        %v276 = vmul.f32 %v261, %v261
        %v277 = vmul.f32 %v262, %v262
        %v278 = vsel %vm211, %v263, 0.0
        %v279 = vsel %vm211, %v264, 0.0
        %v280 = vadd.f32 %v278, %v279
        %v281 = vsel %vm211, %v265, 0.0
        %v282 = vadd.f32 %v280, %v281
        %v283 = vsel %vm211, %v266, 0.0
        %v284 = vadd.f32 %v282, %v283
        %v285 = vsel %vm211, %v267, 0.0
        %v286 = vadd.f32 %v284, %v285
        %v287 = vsel %vm211, %v268, 0.0
        %v288 = vadd.f32 %v286, %v287
        %v289 = vsel %vm211, %v269, 0.0
        %v290 = vadd.f32 %v288, %v289
        %v291 = vsel %vm211, %v270, 0.0
        %v292 = vadd.f32 %v290, %v291
        %v293 = vsel %vm211, %v271, 0.0
        %v294 = vadd.f32 %v292, %v293
        %v295 = vsel %vm211, %v272, 0.0
        %v296 = vadd.f32 %v294, %v295
        %v297 = vsel %vm211, %v273, 0.0
        %v298 = vadd.f32 %v296, %v297
        %v299 = vsel %vm211, %v274, 0.0
        %v300 = vadd.f32 %v298, %v299
        %v301 = vsel %vm211, %v275, 0.0
        %v302 = vadd.f32 %v300, %v301
        %v303 = vsel %vm211, %v276, 0.0
        %v304 = vadd.f32 %v302, %v303
        %v305 = vsel %vm211, %v277, 0.0
        %v306 = vadd.f32 %v304, %v305
        %v307 = vrot.slane %v306, 4
        %v308 = vadd.f32 %v306, %v307
        %v309 = vrot.slane %v308, 2
        %v310 = vadd.f32 %v308, %v309
        %v311 = vrot.slane %v310, 1
        %v312 = vadd.f32 %v310, %v311
        %v313 = vmul.f32 %v312, 0.00952381
        %v314 = vld [vmem:[%s2] sm:$0x1]
        %v315 = vadd.f32 %v313, 1e-05
        %v316 = vrsqrt.pop %v315
        %v317 = vmul.f32 %v314, %v316
        %v319 = vlaneseq
        %v320 = vshrl.u32 %v319, 7
        %v321 = vsub.s32 0, %v320
        %v322 = vrot.slane %v317, %v321
        %v324 = vmul.f32 %v248, %v322
        %v325 = vmul.f32 %v249, %v322
        %v326 = vmul.f32 %v250, %v322
        %v327 = vmul.f32 %v251, %v322
        %v328 = vmul.f32 %v252, %v322
        %v329 = vmul.f32 %v253, %v322
        %v330 = vmul.f32 %v254, %v322
        %v331 = vmul.f32 %v255, %v322
        %v332 = vmul.f32 %v256, %v322
        %v333 = vmul.f32 %v257, %v322
        %v334 = vmul.f32 %v258, %v322
        %v335 = vmul.f32 %v259, %v322
        %v336 = vmul.f32 %v260, %v322
        %v337 = vmul.f32 %v261, %v322
        %v338 = vmul.f32 %v262, %v322
        %v339 = vld [vmem:[%s3] sm:$0x1]
        %v341 = vlaneseq
        %v342 = vshrl.u32 %v341, 7
        %v343 = vsub.s32 0, %v342
        %v344 = vrot.slane %v339, %v343
        %v346 = vadd.f32 %v324, %v344
        %v347 = vadd.f32 %v325, %v344
        %v348 = vadd.f32 %v326, %v344
        %v349 = vadd.f32 %v327, %v344
        %v350 = vadd.f32 %v328, %v344
        %v351 = vadd.f32 %v329, %v344
        %v352 = vadd.f32 %v330, %v344
        %v353 = vadd.f32 %v331, %v344
        %v354 = vadd.f32 %v332, %v344
        %v355 = vadd.f32 %v333, %v344
        %v356 = vadd.f32 %v334, %v344
        %v357 = vadd.f32 %v335, %v344
        %v358 = vadd.f32 %v336, %v344
        %v359 = vadd.f32 %v337, %v344
        %v360 = vadd.f32 %v338, %v344
        %361 = vst [vmem:[#allocation2] sm:$0xff] 0.0
        %362 = vst [vmem:[#allocation2 + $0x8] sm:$0xff] 0.0
        %363 = vst [vmem:[#allocation2 + $0x10] sm:$0xff] 0.0
        %364 = vst [vmem:[#allocation2 + $0x18] sm:$0xff] 0.0
        %365 = vst [vmem:[#allocation2 + $0x20] sm:$0xff] 0.0
        %366 = vst [vmem:[#allocation2 + $0x28] sm:$0xff] 0.0
        %s367 = scalar_lea.vmem [#allocation2], 144
        %368 = vst [vmem:[%s367] sm:$0xff] 0.0
        %369 = vst [vmem:[%s367 + $0x8] sm:$0xff] 0.0
        %370 = vst [vmem:[%s367 + $0x10] sm:$0xff] 0.0
        %371 = vst [vmem:[%s367 + $0x18] sm:$0xff] 0.0
        %372 = vst [vmem:[%s367 + $0x20] sm:$0xff] 0.0
        %373 = vst [vmem:[%s367 + $0x28] sm:$0xff] 0.0
        %374 = vst [vmem:[#allocation2] sm:$0xff] 0.0
        %375 = vst [vmem:[#allocation2 + $0x30] sm:$0xff] 0.0
        %376 = vst [vmem:[#allocation2 + $0x60] sm:$0xff] 0.0
        %377 = vst [vmem:[#allocation2 + $0x90] sm:$0xff] 0.0
        %s378 = scalar_lea.vmem [#allocation2], 40
        %379 = vst [vmem:[%s378] sm:$0xff] 0.0
        %380 = vst [vmem:[%s378 + $0x30] sm:$0xff] 0.0
        %381 = vst [vmem:[%s378 + $0x60] sm:$0xff] 0.0
        %382 = vst [vmem:[%s378 + $0x90] sm:$0xff] 0.0
        %383 = vst [vmem:[#allocation2] sm:$0x1] 0.0
        %384 = vst [vmem:[#allocation2 + $0x8] sm:$0x1] 0.0
        %385 = vst [vmem:[#allocation2 + $0x10] sm:$0x1] 0.0
        %386 = vst [vmem:[#allocation2 + $0x18] sm:$0x1] 0.0
        %387 = vst [vmem:[#allocation2 + $0x20] sm:$0x1] 0.0
        %388 = vst [vmem:[#allocation2 + $0x28] sm:$0x1] 0.0
        %389 = vst [vmem:[#allocation2 + $0x30] sm:$0x1] 0.0
        %390 = vst [vmem:[#allocation2 + $0x38] sm:$0x1] 0.0
        %391 = vst [vmem:[#allocation2 + $0x40] sm:$0x1] 0.0
        %392 = vst [vmem:[#allocation2 + $0x48] sm:$0x1] 0.0
        %393 = vst [vmem:[#allocation2 + $0x50] sm:$0x1] 0.0
        %394 = vst [vmem:[#allocation2 + $0x58] sm:$0x1] 0.0
        %395 = vst [vmem:[#allocation2 + $0x60] sm:$0x1] 0.0
        %396 = vst [vmem:[#allocation2 + $0x68] sm:$0x1] 0.0
        %397 = vst [vmem:[#allocation2 + $0x70] sm:$0x1] 0.0
        %398 = vst [vmem:[#allocation2 + $0x78] sm:$0x1] 0.0
        %399 = vst [vmem:[#allocation2 + $0x80] sm:$0x1] 0.0
        %400 = vst [vmem:[#allocation2 + $0x88] sm:$0x1] 0.0
        %401 = vst [vmem:[#allocation2 + $0x90] sm:$0x1] 0.0
        %402 = vst [vmem:[#allocation2 + $0x98] sm:$0x1] 0.0
        %403 = vst [vmem:[#allocation2 + $0xa0] sm:$0x1] 0.0
        %404 = vst [vmem:[#allocation2 + $0xa8] sm:$0x1] 0.0
        %405 = vst [vmem:[#allocation2 + $0xb0] sm:$0x1] 0.0
        %406 = vst [vmem:[#allocation2 + $0xb8] sm:$0x1] 0.0
        %407 = vst [vmem:[#allocation2 + $0x7] sm:$0x1] 0.0
        %408 = vst [vmem:[#allocation2 + $0xf] sm:$0x1] 0.0
        %409 = vst [vmem:[#allocation2 + $0x17] sm:$0x1] 0.0
        %410 = vst [vmem:[#allocation2 + $0x1f] sm:$0x1] 0.0
        %411 = vst [vmem:[#allocation2 + $0x27] sm:$0x1] 0.0
        %412 = vst [vmem:[#allocation2 + $0x2f] sm:$0x1] 0.0
        %413 = vst [vmem:[#allocation2 + $0x37] sm:$0x1] 0.0
        %414 = vst [vmem:[#allocation2 + $0x3f] sm:$0x1] 0.0
        %415 = vst [vmem:[#allocation2 + $0x47] sm:$0x1] 0.0
        %416 = vst [vmem:[#allocation2 + $0x4f] sm:$0x1] 0.0
        %417 = vst [vmem:[#allocation2 + $0x57] sm:$0x1] 0.0
        %418 = vst [vmem:[#allocation2 + $0x5f] sm:$0x1] 0.0
        %419 = vst [vmem:[#allocation2 + $0x67] sm:$0x1] 0.0
        %420 = vst [vmem:[#allocation2 + $0x6f] sm:$0x1] 0.0
        %421 = vst [vmem:[#allocation2 + $0x77] sm:$0x1] 0.0
        %422 = vst [vmem:[#allocation2 + $0x7f] sm:$0x1] 0.0
        %423 = vst [vmem:[#allocation2 + $0x87] sm:$0x1] 0.0
        %424 = vst [vmem:[#allocation2 + $0x8f] sm:$0x1] 0.0
        %425 = vst [vmem:[#allocation2 + $0x97] sm:$0x1] 0.0
        %426 = vst [vmem:[#allocation2 + $0x9f] sm:$0x1] 0.0
        %427 = vst [vmem:[#allocation2 + $0xa7] sm:$0x1] 0.0
        %428 = vst [vmem:[#allocation2 + $0xaf] sm:$0x1] 0.0
        %429 = vst [vmem:[#allocation2 + $0xb7] sm:$0x1] 0.0
        %430 = vst [vmem:[#allocation2 + $0xbf] sm:$0x1] 0.0
        %s431 = scalar_lea.vmem [#allocation2], 56
        %432 = vst.msk [vmem:[%s431 + $0x1] sm:$0x7f] %vm211, %v346
        %433 = vst.msk [vmem:[%s431 + $0x9] sm:$0x7f] %vm211, %v347
        %434 = vst.msk [vmem:[%s431 + $0x11] sm:$0x7f] %vm211, %v348
        %435 = vst.msk [vmem:[%s431 + $0x19] sm:$0x7f] %vm211, %v349
        %436 = vst.msk [vmem:[%s431 + $0x21] sm:$0x7f] %vm211, %v350
        %437 = vst.msk [vmem:[%s431 + $0x31] sm:$0x7f] %vm211, %v351
        %438 = vst.msk [vmem:[%s431 + $0x39] sm:$0x7f] %vm211, %v352
        %439 = vst.msk [vmem:[%s431 + $0x41] sm:$0x7f] %vm211, %v353
        %440 = vst.msk [vmem:[%s431 + $0x49] sm:$0x7f] %vm211, %v354
        %441 = vst.msk [vmem:[%s431 + $0x51] sm:$0x7f] %vm211, %v355
        %442 = vst.msk [vmem:[%s431 + $0x61] sm:$0x7f] %vm211, %v356
        %443 = vst.msk [vmem:[%s431 + $0x69] sm:$0x7f] %vm211, %v357
        %444 = vst.msk [vmem:[%s431 + $0x71] sm:$0x7f] %vm211, %v358
        %445 = vst.msk [vmem:[%s431 + $0x79] sm:$0x7f] %vm211, %v359
        %446 = vst.msk [vmem:[%s431 + $0x81] sm:$0x7f] %vm211, %v360
        %462 = vrot.lane.b32.xlu0 %v346, 16
        %v463 = vpop.permute.xlu0 %462
        %464 = vrot.lane.b32.xlu0 %v347, 16
        %v465 = vpop.permute.xlu0 %464
        %466 = vrot.lane.b32.xlu0 %v348, 16
        %v467 = vpop.permute.xlu0 %466
        %468 = vrot.lane.b32.xlu0 %v349, 16
        %v469 = vpop.permute.xlu0 %468
        %470 = vrot.lane.b32.xlu0 %v350, 16
        %v471 = vpop.permute.xlu0 %470
        %472 = vrot.lane.b32.xlu0 %v351, 16
        %v473 = vpop.permute.xlu0 %472
        %474 = vrot.lane.b32.xlu0 %v352, 16
        %v475 = vpop.permute.xlu0 %474
        %476 = vrot.lane.b32.xlu0 %v353, 16
        %v477 = vpop.permute.xlu0 %476
        %478 = vrot.lane.b32.xlu0 %v354, 16
        %v479 = vpop.permute.xlu0 %478
        %480 = vrot.lane.b32.xlu0 %v355, 16
        %v481 = vpop.permute.xlu0 %480
        %482 = vrot.lane.b32.xlu0 %v356, 16
        %v483 = vpop.permute.xlu0 %482
        %484 = vrot.lane.b32.xlu0 %v357, 16
        %v485 = vpop.permute.xlu0 %484
        %486 = vrot.lane.b32.xlu0 %v358, 16
        %v487 = vpop.permute.xlu0 %486
        %488 = vrot.lane.b32.xlu0 %v359, 16
        %v489 = vpop.permute.xlu0 %488
        %490 = vrot.lane.b32.xlu0 %v360, 16
        %v491 = vpop.permute.xlu0 %490
        %vm507 = vcmask 260224
        %508 = vst.msk [vmem:[%s431] sm:$0x7f] %vm507, %v463
        %509 = vst.msk [vmem:[%s431 + $0x8] sm:$0x7f] %vm507, %v465
        %510 = vst.msk [vmem:[%s431 + $0x10] sm:$0x7f] %vm507, %v467
        %511 = vst.msk [vmem:[%s431 + $0x18] sm:$0x7f] %vm507, %v469
        %512 = vst.msk [vmem:[%s431 + $0x20] sm:$0x7f] %vm507, %v471
        %513 = vst.msk [vmem:[%s431 + $0x30] sm:$0x7f] %vm507, %v473
        %514 = vst.msk [vmem:[%s431 + $0x38] sm:$0x7f] %vm507, %v475
        %515 = vst.msk [vmem:[%s431 + $0x40] sm:$0x7f] %vm507, %v477
        %516 = vst.msk [vmem:[%s431 + $0x48] sm:$0x7f] %vm507, %v479
        %517 = vst.msk [vmem:[%s431 + $0x50] sm:$0x7f] %vm507, %v481
        %518 = vst.msk [vmem:[%s431 + $0x60] sm:$0x7f] %vm507, %v483
        %519 = vst.msk [vmem:[%s431 + $0x68] sm:$0x7f] %vm507, %v485
        %520 = vst.msk [vmem:[%s431 + $0x70] sm:$0x7f] %vm507, %v487
        %521 = vst.msk [vmem:[%s431 + $0x78] sm:$0x7f] %vm507, %v489
        %522 = vst.msk [vmem:[%s431 + $0x80] sm:$0x7f] %vm507, %v491
        %523 = vrot.lane.b32.xlu0 %v346, 32
        %v524 = vpop.permute.xlu0 %523
        %525 = vrot.lane.b32.xlu0 %v347, 32
        %v526 = vpop.permute.xlu0 %525
        %527 = vrot.lane.b32.xlu0 %v348, 32
        %v528 = vpop.permute.xlu0 %527
        %529 = vrot.lane.b32.xlu0 %v349, 32
        %v530 = vpop.permute.xlu0 %529
        %531 = vrot.lane.b32.xlu0 %v350, 32
        %v532 = vpop.permute.xlu0 %531
        %533 = vrot.lane.b32.xlu0 %v351, 32
        %v534 = vpop.permute.xlu0 %533
        %535 = vrot.lane.b32.xlu0 %v352, 32
        %v536 = vpop.permute.xlu0 %535
        %537 = vrot.lane.b32.xlu0 %v353, 32
        %v538 = vpop.permute.xlu0 %537
        %539 = vrot.lane.b32.xlu0 %v354, 32
        %v540 = vpop.permute.xlu0 %539
        %541 = vrot.lane.b32.xlu0 %v355, 32
        %v542 = vpop.permute.xlu0 %541
        %543 = vrot.lane.b32.xlu0 %v356, 32
        %v544 = vpop.permute.xlu0 %543
        %545 = vrot.lane.b32.xlu0 %v357, 32
        %v546 = vpop.permute.xlu0 %545
        %547 = vrot.lane.b32.xlu0 %v358, 32
        %v548 = vpop.permute.xlu0 %547
        %549 = vrot.lane.b32.xlu0 %v359, 32
        %v550 = vpop.permute.xlu0 %549
        %551 = vrot.lane.b32.xlu0 %v360, 32
        %v552 = vpop.permute.xlu0 %551
        %s568 = scalar_lea.vmem [#allocation2], 48
        %vm569 = vcmask 391424
        %570 = vst.msk [vmem:[%s568 + $0x1] sm:$0x7f] %vm569, %v524
        %571 = vst.msk [vmem:[%s568 + $0x9] sm:$0x7f] %vm569, %v526
        %572 = vst.msk [vmem:[%s568 + $0x11] sm:$0x7f] %vm569, %v528
        %573 = vst.msk [vmem:[%s568 + $0x19] sm:$0x7f] %vm569, %v530
        %574 = vst.msk [vmem:[%s568 + $0x21] sm:$0x7f] %vm569, %v532
        %575 = vst.msk [vmem:[%s568 + $0x31] sm:$0x7f] %vm569, %v534
        %576 = vst.msk [vmem:[%s568 + $0x39] sm:$0x7f] %vm569, %v536
        %577 = vst.msk [vmem:[%s568 + $0x41] sm:$0x7f] %vm569, %v538
        %578 = vst.msk [vmem:[%s568 + $0x49] sm:$0x7f] %vm569, %v540
        %579 = vst.msk [vmem:[%s568 + $0x51] sm:$0x7f] %vm569, %v542
        %580 = vst.msk [vmem:[%s568 + $0x61] sm:$0x7f] %vm569, %v544
        %581 = vst.msk [vmem:[%s568 + $0x69] sm:$0x7f] %vm569, %v546
        %582 = vst.msk [vmem:[%s568 + $0x71] sm:$0x7f] %vm569, %v548
        %583 = vst.msk [vmem:[%s568 + $0x79] sm:$0x7f] %vm569, %v550
        %584 = vst.msk [vmem:[%s568 + $0x81] sm:$0x7f] %vm569, %v552
        %585 = vrot.lane.b32.xlu0 %v346, 48
        %v586 = vpop.permute.xlu0 %585
        %587 = vrot.lane.b32.xlu0 %v347, 48
        %v588 = vpop.permute.xlu0 %587
        %589 = vrot.lane.b32.xlu0 %v348, 48
        %v590 = vpop.permute.xlu0 %589
        %591 = vrot.lane.b32.xlu0 %v349, 48
        %v592 = vpop.permute.xlu0 %591
        %593 = vrot.lane.b32.xlu0 %v350, 48
        %v594 = vpop.permute.xlu0 %593
        %595 = vrot.lane.b32.xlu0 %v351, 48
        %v596 = vpop.permute.xlu0 %595
        %597 = vrot.lane.b32.xlu0 %v352, 48
        %v598 = vpop.permute.xlu0 %597
        %599 = vrot.lane.b32.xlu0 %v353, 48
        %v600 = vpop.permute.xlu0 %599
        %601 = vrot.lane.b32.xlu0 %v354, 48
        %v602 = vpop.permute.xlu0 %601
        %603 = vrot.lane.b32.xlu0 %v355, 48
        %v604 = vpop.permute.xlu0 %603
        %605 = vrot.lane.b32.xlu0 %v356, 48
        %v606 = vpop.permute.xlu0 %605
        %607 = vrot.lane.b32.xlu0 %v357, 48
        %v608 = vpop.permute.xlu0 %607
        %609 = vrot.lane.b32.xlu0 %v358, 48
        %v610 = vpop.permute.xlu0 %609
        %611 = vrot.lane.b32.xlu0 %v359, 48
        %v612 = vpop.permute.xlu0 %611
        %613 = vrot.lane.b32.xlu0 %v360, 48
        %v614 = vpop.permute.xlu0 %613
        %vm630 = vcmask 522624
        %631 = vst.msk [vmem:[%s568] sm:$0x7f] %vm630, %v586
        %632 = vst.msk [vmem:[%s568 + $0x8] sm:$0x7f] %vm630, %v588
        %633 = vst.msk [vmem:[%s568 + $0x10] sm:$0x7f] %vm630, %v590
        %634 = vst.msk [vmem:[%s568 + $0x18] sm:$0x7f] %vm630, %v592
        %635 = vst.msk [vmem:[%s568 + $0x20] sm:$0x7f] %vm630, %v594
        %636 = vst.msk [vmem:[%s568 + $0x30] sm:$0x7f] %vm630, %v596
        %637 = vst.msk [vmem:[%s568 + $0x38] sm:$0x7f] %vm630, %v598
        %638 = vst.msk [vmem:[%s568 + $0x40] sm:$0x7f] %vm630, %v600
        %639 = vst.msk [vmem:[%s568 + $0x48] sm:$0x7f] %vm630, %v602
        %640 = vst.msk [vmem:[%s568 + $0x50] sm:$0x7f] %vm630, %v604
        %641 = vst.msk [vmem:[%s568 + $0x60] sm:$0x7f] %vm630, %v606
        %642 = vst.msk [vmem:[%s568 + $0x68] sm:$0x7f] %vm630, %v608
        %643 = vst.msk [vmem:[%s568 + $0x70] sm:$0x7f] %vm630, %v610
        %644 = vst.msk [vmem:[%s568 + $0x78] sm:$0x7f] %vm630, %v612
        %645 = vst.msk [vmem:[%s568 + $0x80] sm:$0x7f] %vm630, %v614
        %646 = vrot.lane.b32.xlu0 %v346, 64
        %v647 = vpop.permute.xlu0 %646
        %648 = vrot.lane.b32.xlu0 %v347, 64
        %v649 = vpop.permute.xlu0 %648
        %650 = vrot.lane.b32.xlu0 %v348, 64
        %v651 = vpop.permute.xlu0 %650
        %652 = vrot.lane.b32.xlu0 %v349, 64
        %v653 = vpop.permute.xlu0 %652
        %654 = vrot.lane.b32.xlu0 %v350, 64
        %v655 = vpop.permute.xlu0 %654
        %656 = vrot.lane.b32.xlu0 %v351, 64
        %v657 = vpop.permute.xlu0 %656
        %658 = vrot.lane.b32.xlu0 %v352, 64
        %v659 = vpop.permute.xlu0 %658
        %660 = vrot.lane.b32.xlu0 %v353, 64
        %v661 = vpop.permute.xlu0 %660
        %662 = vrot.lane.b32.xlu0 %v354, 64
        %v663 = vpop.permute.xlu0 %662
        %664 = vrot.lane.b32.xlu0 %v355, 64
        %v665 = vpop.permute.xlu0 %664
        %666 = vrot.lane.b32.xlu0 %v356, 64
        %v667 = vpop.permute.xlu0 %666
        %668 = vrot.lane.b32.xlu0 %v357, 64
        %v669 = vpop.permute.xlu0 %668
        %670 = vrot.lane.b32.xlu0 %v358, 64
        %v671 = vpop.permute.xlu0 %670
        %672 = vrot.lane.b32.xlu0 %v359, 64
        %v673 = vpop.permute.xlu0 %672
        %674 = vrot.lane.b32.xlu0 %v360, 64
        %v675 = vpop.permute.xlu0 %674
        %s691 = scalar_lea.vmem [#allocation2], 8
        %vm692 = vcmask 653824
        %693 = vst.msk [vmem:[%s691 + $0x1] sm:$0x7f] %vm692, %v647
        %694 = vst.msk [vmem:[%s691 + $0x9] sm:$0x7f] %vm692, %v649
        %695 = vst.msk [vmem:[%s691 + $0x11] sm:$0x7f] %vm692, %v651
        %696 = vst.msk [vmem:[%s691 + $0x19] sm:$0x7f] %vm692, %v653
        %697 = vst.msk [vmem:[%s691 + $0x21] sm:$0x7f] %vm692, %v655
        %698 = vst.msk [vmem:[%s691 + $0x31] sm:$0x7f] %vm692, %v657
        %699 = vst.msk [vmem:[%s691 + $0x39] sm:$0x7f] %vm692, %v659
        %700 = vst.msk [vmem:[%s691 + $0x41] sm:$0x7f] %vm692, %v661
        %701 = vst.msk [vmem:[%s691 + $0x49] sm:$0x7f] %vm692, %v663
        %702 = vst.msk [vmem:[%s691 + $0x51] sm:$0x7f] %vm692, %v665
        %703 = vst.msk [vmem:[%s691 + $0x61] sm:$0x7f] %vm692, %v667
        %704 = vst.msk [vmem:[%s691 + $0x69] sm:$0x7f] %vm692, %v669
        %705 = vst.msk [vmem:[%s691 + $0x71] sm:$0x7f] %vm692, %v671
        %706 = vst.msk [vmem:[%s691 + $0x79] sm:$0x7f] %vm692, %v673
        %707 = vst.msk [vmem:[%s691 + $0x81] sm:$0x7f] %vm692, %v675
        %708 = vrot.lane.b32.xlu0 %v346, 80
        %v709 = vpop.permute.xlu0 %708
        %710 = vrot.lane.b32.xlu0 %v347, 80
        %v711 = vpop.permute.xlu0 %710
        %712 = vrot.lane.b32.xlu0 %v348, 80
        %v713 = vpop.permute.xlu0 %712
        %714 = vrot.lane.b32.xlu0 %v349, 80
        %v715 = vpop.permute.xlu0 %714
        %716 = vrot.lane.b32.xlu0 %v350, 80
        %v717 = vpop.permute.xlu0 %716
        %718 = vrot.lane.b32.xlu0 %v351, 80
        %v719 = vpop.permute.xlu0 %718
        %720 = vrot.lane.b32.xlu0 %v352, 80
        %v721 = vpop.permute.xlu0 %720
        %722 = vrot.lane.b32.xlu0 %v353, 80
        %v723 = vpop.permute.xlu0 %722
        %724 = vrot.lane.b32.xlu0 %v354, 80
        %v725 = vpop.permute.xlu0 %724
        %726 = vrot.lane.b32.xlu0 %v355, 80
        %v727 = vpop.permute.xlu0 %726
        %728 = vrot.lane.b32.xlu0 %v356, 80
        %v729 = vpop.permute.xlu0 %728
        %730 = vrot.lane.b32.xlu0 %v357, 80
        %v731 = vpop.permute.xlu0 %730
        %732 = vrot.lane.b32.xlu0 %v358, 80
        %v733 = vpop.permute.xlu0 %732
        %734 = vrot.lane.b32.xlu0 %v359, 80
        %v735 = vpop.permute.xlu0 %734
        %736 = vrot.lane.b32.xlu0 %v360, 80
        %v737 = vpop.permute.xlu0 %736
        %vm753 = vcmask 785024
        %754 = vst.msk [vmem:[%s691] sm:$0x7f] %vm753, %v709
        %755 = vst.msk [vmem:[%s691 + $0x8] sm:$0x7f] %vm753, %v711
        %756 = vst.msk [vmem:[%s691 + $0x10] sm:$0x7f] %vm753, %v713
        %757 = vst.msk [vmem:[%s691 + $0x18] sm:$0x7f] %vm753, %v715
        %758 = vst.msk [vmem:[%s691 + $0x20] sm:$0x7f] %vm753, %v717
        %759 = vst.msk [vmem:[%s691 + $0x30] sm:$0x7f] %vm753, %v719
        %760 = vst.msk [vmem:[%s691 + $0x38] sm:$0x7f] %vm753, %v721
        %761 = vst.msk [vmem:[%s691 + $0x40] sm:$0x7f] %vm753, %v723
        %762 = vst.msk [vmem:[%s691 + $0x48] sm:$0x7f] %vm753, %v725
        %763 = vst.msk [vmem:[%s691 + $0x50] sm:$0x7f] %vm753, %v727
        %764 = vst.msk [vmem:[%s691 + $0x60] sm:$0x7f] %vm753, %v729
        %765 = vst.msk [vmem:[%s691 + $0x68] sm:$0x7f] %vm753, %v731
        %766 = vst.msk [vmem:[%s691 + $0x70] sm:$0x7f] %vm753, %v733
        %767 = vst.msk [vmem:[%s691 + $0x78] sm:$0x7f] %vm753, %v735
        %768 = vst.msk [vmem:[%s691 + $0x80] sm:$0x7f] %vm753, %v737
        %769 = vrot.lane.b32.xlu0 %v346, 96
        %v770 = vpop.permute.xlu0 %769
        %771 = vrot.lane.b32.xlu0 %v347, 96
        %v772 = vpop.permute.xlu0 %771
        %773 = vrot.lane.b32.xlu0 %v348, 96
        %v774 = vpop.permute.xlu0 %773
        %775 = vrot.lane.b32.xlu0 %v349, 96
        %v776 = vpop.permute.xlu0 %775
        %777 = vrot.lane.b32.xlu0 %v350, 96
        %v778 = vpop.permute.xlu0 %777
        %779 = vrot.lane.b32.xlu0 %v351, 96
        %v780 = vpop.permute.xlu0 %779
        %781 = vrot.lane.b32.xlu0 %v352, 96
        %v782 = vpop.permute.xlu0 %781
        %783 = vrot.lane.b32.xlu0 %v353, 96
        %v784 = vpop.permute.xlu0 %783
        %785 = vrot.lane.b32.xlu0 %v354, 96
        %v786 = vpop.permute.xlu0 %785
        %787 = vrot.lane.b32.xlu0 %v355, 96
        %v788 = vpop.permute.xlu0 %787
        %789 = vrot.lane.b32.xlu0 %v356, 96
        %v790 = vpop.permute.xlu0 %789
        %791 = vrot.lane.b32.xlu0 %v357, 96
        %v792 = vpop.permute.xlu0 %791
        %793 = vrot.lane.b32.xlu0 %v358, 96
        %v794 = vpop.permute.xlu0 %793
        %795 = vrot.lane.b32.xlu0 %v359, 96
        %v796 = vpop.permute.xlu0 %795
        %797 = vrot.lane.b32.xlu0 %v360, 96
        %v798 = vpop.permute.xlu0 %797
        %vm814 = vcmask 916224
        %815 = vst.msk [vmem:[#allocation2 + $0x1] sm:$0x7f] %vm814, %v770
        %816 = vst.msk [vmem:[#allocation2 + $0x9] sm:$0x7f] %vm814, %v772
        %817 = vst.msk [vmem:[#allocation2 + $0x11] sm:$0x7f] %vm814, %v774
        %818 = vst.msk [vmem:[#allocation2 + $0x19] sm:$0x7f] %vm814, %v776
        %819 = vst.msk [vmem:[#allocation2 + $0x21] sm:$0x7f] %vm814, %v778
        %820 = vst.msk [vmem:[#allocation2 + $0x31] sm:$0x7f] %vm814, %v780
        %821 = vst.msk [vmem:[#allocation2 + $0x39] sm:$0x7f] %vm814, %v782
        %822 = vst.msk [vmem:[#allocation2 + $0x41] sm:$0x7f] %vm814, %v784
        %823 = vst.msk [vmem:[#allocation2 + $0x49] sm:$0x7f] %vm814, %v786
        %824 = vst.msk [vmem:[#allocation2 + $0x51] sm:$0x7f] %vm814, %v788
        %825 = vst.msk [vmem:[#allocation2 + $0x61] sm:$0x7f] %vm814, %v790
        %826 = vst.msk [vmem:[#allocation2 + $0x69] sm:$0x7f] %vm814, %v792
        %827 = vst.msk [vmem:[#allocation2 + $0x71] sm:$0x7f] %vm814, %v794
        %828 = vst.msk [vmem:[#allocation2 + $0x79] sm:$0x7f] %vm814, %v796
        %829 = vst.msk [vmem:[#allocation2 + $0x81] sm:$0x7f] %vm814, %v798
        %830 = vrot.lane.b32.xlu0 %v346, 112
        %v831 = vpop.permute.xlu0 %830
        %832 = vrot.lane.b32.xlu0 %v347, 112
        %v833 = vpop.permute.xlu0 %832
        %834 = vrot.lane.b32.xlu0 %v348, 112
        %v835 = vpop.permute.xlu0 %834
        %836 = vrot.lane.b32.xlu0 %v349, 112
        %v837 = vpop.permute.xlu0 %836
        %838 = vrot.lane.b32.xlu0 %v350, 112
        %v839 = vpop.permute.xlu0 %838
        %840 = vrot.lane.b32.xlu0 %v351, 112
        %v841 = vpop.permute.xlu0 %840
        %842 = vrot.lane.b32.xlu0 %v352, 112
        %v843 = vpop.permute.xlu0 %842
        %844 = vrot.lane.b32.xlu0 %v353, 112
        %v845 = vpop.permute.xlu0 %844
        %846 = vrot.lane.b32.xlu0 %v354, 112
        %v847 = vpop.permute.xlu0 %846
        %848 = vrot.lane.b32.xlu0 %v355, 112
        %v849 = vpop.permute.xlu0 %848
        %850 = vrot.lane.b32.xlu0 %v356, 112
        %v851 = vpop.permute.xlu0 %850
        %852 = vrot.lane.b32.xlu0 %v357, 112
        %v853 = vpop.permute.xlu0 %852
        %854 = vrot.lane.b32.xlu0 %v358, 112
        %v855 = vpop.permute.xlu0 %854
        %856 = vrot.lane.b32.xlu0 %v359, 112
        %v857 = vpop.permute.xlu0 %856
        %858 = vrot.lane.b32.xlu0 %v360, 112
        %v859 = vpop.permute.xlu0 %858
        %vm875 = vcmask 1047424
        %876 = vst.msk [vmem:[#allocation2] sm:$0x7f] %vm875, %v831
        %877 = vst.msk [vmem:[#allocation2 + $0x8] sm:$0x7f] %vm875, %v833
        %878 = vst.msk [vmem:[#allocation2 + $0x10] sm:$0x7f] %vm875, %v835
        %879 = vst.msk [vmem:[#allocation2 + $0x18] sm:$0x7f] %vm875, %v837
        %880 = vst.msk [vmem:[#allocation2 + $0x20] sm:$0x7f] %vm875, %v839
        %881 = vst.msk [vmem:[#allocation2 + $0x30] sm:$0x7f] %vm875, %v841
        %882 = vst.msk [vmem:[#allocation2 + $0x38] sm:$0x7f] %vm875, %v843
        %883 = vst.msk [vmem:[#allocation2 + $0x40] sm:$0x7f] %vm875, %v845
        %884 = vst.msk [vmem:[#allocation2 + $0x48] sm:$0x7f] %vm875, %v847
        %885 = vst.msk [vmem:[#allocation2 + $0x50] sm:$0x7f] %vm875, %v849
        %886 = vst.msk [vmem:[#allocation2 + $0x60] sm:$0x7f] %vm875, %v851
        %887 = vst.msk [vmem:[#allocation2 + $0x68] sm:$0x7f] %vm875, %v853
        %888 = vst.msk [vmem:[#allocation2 + $0x70] sm:$0x7f] %vm875, %v855
        %889 = vst.msk [vmem:[#allocation2 + $0x78] sm:$0x7f] %vm875, %v857
        %890 = vst.msk [vmem:[#allocation2 + $0x80] sm:$0x7f] %vm875, %v859
        %v891 = vld [vmem:[#allocation2] sm:$0xff]
        %v892 = vld [vmem:[#allocation2 + $0x8] sm:$0xff]
        %v893 = vld [vmem:[#allocation2 + $0x10] sm:$0xff]
        %v894 = vld [vmem:[#allocation2 + $0x18] sm:$0xff]
        %v895 = vld [vmem:[#allocation2 + $0x20] sm:$0xff]
        %v896 = vld [vmem:[#allocation2 + $0x28] sm:$0xff]
        %v897 = vld [vmem:[#allocation2 + $0x30] sm:$0xff]
        %v898 = vld [vmem:[#allocation2 + $0x38] sm:$0xff]
        %v899 = vld [vmem:[#allocation2 + $0x40] sm:$0xff]
        %v900 = vld [vmem:[#allocation2 + $0x48] sm:$0xff]
        %v901 = vld [vmem:[#allocation2 + $0x50] sm:$0xff]
        %v902 = vld [vmem:[#allocation2 + $0x58] sm:$0xff]
        %v903 = vld [vmem:[#allocation2 + $0x60] sm:$0xff]
        %v904 = vld [vmem:[#allocation2 + $0x68] sm:$0xff]
        %v905 = vld [vmem:[#allocation2 + $0x70] sm:$0xff]
        %v906 = vld [vmem:[#allocation2 + $0x78] sm:$0xff]
        %v907 = vld [vmem:[#allocation2 + $0x80] sm:$0xff]
        %v908 = vld [vmem:[#allocation2 + $0x88] sm:$0xff]
        %v909 = vld [vmem:[#allocation2 + $0x90] sm:$0xff]
        %v910 = vld [vmem:[#allocation2 + $0x98] sm:$0xff]
        %v911 = vld [vmem:[#allocation2 + $0xa0] sm:$0xff]
        %v912 = vld [vmem:[#allocation2 + $0xa8] sm:$0xff]
        %v913 = vld [vmem:[#allocation2 + $0xb0] sm:$0xff]
        %v914 = vld [vmem:[#allocation2 + $0xb8] sm:$0xff]
        %v915 = vld [vmem:[%s1] sm:$0xff]
        %v916 = vld [vmem:[%s1 + $0x8] sm:$0xff]
        %v917 = vld [vmem:[%s1 + $0x10] sm:$0xff]
        %v918 = vld [vmem:[%s1 + $0x18] sm:$0xff]
        %v919 = vld [vmem:[%s1 + $0x20] sm:$0xff]
        %v920 = vld [vmem:[%s1 + $0x28] sm:$0xff]
        %v921 = vld [vmem:[%s1 + $0x30] sm:$0xff]
        %v922 = vld [vmem:[%s1 + $0x38] sm:$0xff]
        %v923 = vld [vmem:[%s1 + $0x40] sm:$0xff]
        %v924 = vld [vmem:[%s1 + $0x48] sm:$0xff]
        %v925 = vld [vmem:[%s1 + $0x50] sm:$0xff]
        %v926 = vld [vmem:[%s1 + $0x58] sm:$0xff]
        %v927 = vld [vmem:[%s1 + $0x60] sm:$0xff]
        %v928 = vld [vmem:[%s1 + $0x68] sm:$0xff]
        %v929 = vld [vmem:[%s1 + $0x70] sm:$0xff]
        %v930 = vld [vmem:[%s1 + $0x78] sm:$0xff]
        %931 = vmatprep.subr.mxu0 0.0
        %932 = vmatpush1.msra.mxu0 %v930
        %933 = vmatprep.subr.mxu0 0.0
        %934 = vmatpush1.msra.mxu0 %v929
        %935 = vmatprep.subr.mxu0 0.0
        %936 = vmatpush1.msra.mxu0 %v928
        %937 = vmatprep.subr.mxu0 0.0
        %938 = vmatpush1.msra.mxu0 %v927
        %939 = vmatprep.subr.mxu0 0.0
        %940 = vmatpush1.msra.mxu0 %v926
        %941 = vmatprep.subr.mxu0 0.0
        %942 = vmatpush1.msra.mxu0 %v925
        %943 = vmatprep.subr.mxu0 0.0
        %944 = vmatpush1.msra.mxu0 %v924
        %945 = vmatprep.subr.mxu0 0.0
        %946 = vmatpush1.msra.mxu0 %v923
        %947 = vmatprep.subr.mxu0 0.0
        %948 = vmatpush1.msra.mxu0 %v922
        %949 = vmatprep.subr.mxu0 0.0
        %950 = vmatpush1.msra.mxu0 %v921
        %951 = vmatprep.subr.mxu0 0.0
        %952 = vmatpush1.msra.mxu0 %v920
        %953 = vmatprep.subr.mxu0 0.0
        %954 = vmatpush1.msra.mxu0 %v919
        %955 = vmatprep.subr.mxu0 0.0
        %956 = vmatpush1.msra.mxu0 %v918
        %957 = vmatprep.subr.mxu0 0.0
        %958 = vmatpush1.msra.mxu0 %v917
        %959 = vmatprep.subr.mxu0 0.0
        %960 = vmatpush1.msra.mxu0 %v916
        %961 = vmatprep.subr.mxu0 0.0
        %962 = vmatpush1.msra.mxu0 %v915
        %963 = vmatprep.subr.mxu0 0.0
        %964 = vmatpush2.msra.mxu0 0.0
        %965 = vmatprep.subr.mxu0 0.0
        %966 = vmatpush2.msra.mxu0 0.0
        %967 = vmatprep.subr.mxu0 0.0
        %968 = vmatpush2.msra.mxu0 0.0
        %969 = vmatprep.subr.mxu0 0.0
        %970 = vmatpush2.msra.mxu0 0.0
        %971 = vmatprep.subr.mxu0 0.0
        %972 = vmatpush2.msra.mxu0 0.0
        %973 = vmatprep.subr.mxu0 0.0
        %974 = vmatpush2.msra.mxu0 0.0
        %975 = vmatprep.subr.mxu0 0.0
        %976 = vmatpush2.msra.mxu0 0.0
        %977 = vmatprep.subr.mxu0 0.0
        %978 = vmatpush2.msra.mxu0 0.0
        %979 = vmatprep.subr.mxu0 0.0
        %980 = vmatpush2.msra.mxu0 0.0
        %981 = vmatprep.subr.mxu0 0.0
        %982 = vmatpush2.msra.mxu0 0.0
        %983 = vmatprep.subr.mxu0 0.0
        %984 = vmatpush2.msra.mxu0 0.0
        %985 = vmatprep.subr.mxu0 0.0
        %986 = vmatpush2.msra.mxu0 0.0
        %987 = vmatprep.subr.mxu0 0.0
        %988 = vmatpush2.msra.mxu0 0.0
        %989 = vmatprep.subr.mxu0 0.0
        %990 = vmatpush2.msra.mxu0 0.0
        %991 = vmatprep.subr.mxu0 0.0
        %992 = vmatpush2.msra.mxu0 0.0
        %993 = vmatprep.subr.mxu0 0.0
        %994 = vmatpush2.msra.mxu0 0.0
        %995 = vmatprep.mubr.f32.mxu0 0.0
        %996 = vmatmul.mubr.f32.gmra.mxu0 %v891
        %v997 = vpop.f32.mrf.mxu0
        %v998 = vadd.f32 0.0, %v997
        %v999 = vpop.f32.mrf.mxu0
        %1000 = vmatprep.mubr.f32.mxu0 0.0
        %1001 = vmatmul.mubr.f32.gmra.mxu0 %v892
        %v1002 = vpop.f32.mrf.mxu0
        %v1003 = vadd.f32 0.0, %v1002
        %v1004 = vpop.f32.mrf.mxu0
        %1005 = vmatprep.mubr.f32.mxu0 0.0
        %1006 = vmatmul.mubr.f32.gmra.mxu0 %v893
        %v1007 = vpop.f32.mrf.mxu0
        %v1008 = vadd.f32 0.0, %v1007
        %v1009 = vpop.f32.mrf.mxu0
        %1010 = vmatprep.mubr.f32.mxu0 0.0
        %1011 = vmatmul.mubr.f32.gmra.mxu0 %v894
        %v1012 = vpop.f32.mrf.mxu0
        %v1013 = vadd.f32 0.0, %v1012
        %v1014 = vpop.f32.mrf.mxu0
        %1015 = vmatprep.mubr.f32.mxu0 0.0
        %1016 = vmatmul.mubr.f32.gmra.mxu0 %v895
        %v1017 = vpop.f32.mrf.mxu0
        %v1018 = vadd.f32 0.0, %v1017
        %v1019 = vpop.f32.mrf.mxu0
        %1020 = vmatprep.mubr.f32.mxu0 0.0
        %1021 = vmatmul.mubr.f32.gmra.mxu0 %v896
        %v1022 = vpop.f32.mrf.mxu0
        %v1023 = vadd.f32 0.0, %v1022
        %v1024 = vpop.f32.mrf.mxu0
        %1025 = vmatprep.mubr.f32.mxu0 0.0
        %1026 = vmatmul.mubr.f32.gmra.mxu0 %v897
        %v1027 = vpop.f32.mrf.mxu0
        %v1028 = vadd.f32 0.0, %v1027
        %v1029 = vpop.f32.mrf.mxu0
        %1030 = vmatprep.mubr.f32.mxu0 0.0
        %1031 = vmatmul.mubr.f32.gmra.mxu0 %v898
        %v1032 = vpop.f32.mrf.mxu0
        %v1033 = vadd.f32 0.0, %v1032
        %v1034 = vpop.f32.mrf.mxu0
        %1035 = vmatprep.mubr.f32.mxu0 0.0
        %1036 = vmatmul.mubr.f32.gmra.mxu0 %v899
        %v1037 = vpop.f32.mrf.mxu0
        %v1038 = vadd.f32 0.0, %v1037
        %v1039 = vpop.f32.mrf.mxu0
        %1040 = vmatprep.mubr.f32.mxu0 0.0
        %1041 = vmatmul.mubr.f32.gmra.mxu0 %v900
        %v1042 = vpop.f32.mrf.mxu0
        %v1043 = vadd.f32 0.0, %v1042
        %v1044 = vpop.f32.mrf.mxu0
        %1045 = vmatprep.mubr.f32.mxu0 0.0
        %1046 = vmatmul.mubr.f32.gmra.mxu0 %v901
        %v1047 = vpop.f32.mrf.mxu0
        %v1048 = vadd.f32 0.0, %v1047
        %v1049 = vpop.f32.mrf.mxu0
        %1050 = vmatprep.mubr.f32.mxu0 0.0
        %1051 = vmatmul.mubr.f32.gmra.mxu0 %v902
        %v1052 = vpop.f32.mrf.mxu0
        %v1053 = vadd.f32 0.0, %v1052
        %v1054 = vpop.f32.mrf.mxu0
        %1055 = vdwg.mxu0
        %1056 = vmatprep.subr.mxu0 0.0
        %1057 = vmatpush1.msra.mxu0 %v930
        %1058 = vmatprep.subr.mxu0 0.0
        %1059 = vmatpush1.msra.mxu0 %v929
        %1060 = vmatprep.subr.mxu0 0.0
        %1061 = vmatpush1.msra.mxu0 %v928
        %1062 = vmatprep.subr.mxu0 0.0
        %1063 = vmatpush1.msra.mxu0 %v927
        %1064 = vmatprep.subr.mxu0 0.0
        %1065 = vmatpush1.msra.mxu0 %v926
        %1066 = vmatprep.subr.mxu0 0.0
        %1067 = vmatpush1.msra.mxu0 %v925
        %1068 = vmatprep.subr.mxu0 0.0
        %1069 = vmatpush1.msra.mxu0 %v924
        %1070 = vmatprep.subr.mxu0 0.0
        %1071 = vmatpush1.msra.mxu0 %v923
        %1072 = vmatprep.subr.mxu0 0.0
        %1073 = vmatpush1.msra.mxu0 %v922
        %1074 = vmatprep.subr.mxu0 0.0
        %1075 = vmatpush1.msra.mxu0 %v921
        %1076 = vmatprep.subr.mxu0 0.0
        %1077 = vmatpush1.msra.mxu0 %v920
        %1078 = vmatprep.subr.mxu0 0.0
        %1079 = vmatpush1.msra.mxu0 %v919
        %1080 = vmatprep.subr.mxu0 0.0
        %1081 = vmatpush1.msra.mxu0 %v918
        %1082 = vmatprep.subr.mxu0 0.0
        %1083 = vmatpush1.msra.mxu0 %v917
        %1084 = vmatprep.subr.mxu0 0.0
        %1085 = vmatpush1.msra.mxu0 %v916
        %1086 = vmatprep.subr.mxu0 0.0
        %1087 = vmatpush1.msra.mxu0 %v915
        %1088 = vmatprep.subr.mxu0 0.0
        %1089 = vmatpush2.msra.mxu0 0.0
        %1090 = vmatprep.subr.mxu0 0.0
        %1091 = vmatpush2.msra.mxu0 0.0
        %1092 = vmatprep.subr.mxu0 0.0
        %1093 = vmatpush2.msra.mxu0 0.0
        %1094 = vmatprep.subr.mxu0 0.0
        %1095 = vmatpush2.msra.mxu0 0.0
        %1096 = vmatprep.subr.mxu0 0.0
        %1097 = vmatpush2.msra.mxu0 0.0
        %1098 = vmatprep.subr.mxu0 0.0
        %1099 = vmatpush2.msra.mxu0 0.0
        %1100 = vmatprep.subr.mxu0 0.0
        %1101 = vmatpush2.msra.mxu0 0.0
        %1102 = vmatprep.subr.mxu0 0.0
        %1103 = vmatpush2.msra.mxu0 0.0
        %1104 = vmatprep.subr.mxu0 0.0
        %1105 = vmatpush2.msra.mxu0 0.0
        %1106 = vmatprep.subr.mxu0 0.0
        %1107 = vmatpush2.msra.mxu0 0.0
        %1108 = vmatprep.subr.mxu0 0.0
        %1109 = vmatpush2.msra.mxu0 0.0
        %1110 = vmatprep.subr.mxu0 0.0
        %1111 = vmatpush2.msra.mxu0 0.0
        %1112 = vmatprep.subr.mxu0 0.0
        %1113 = vmatpush2.msra.mxu0 0.0
        %1114 = vmatprep.subr.mxu0 0.0
        %1115 = vmatpush2.msra.mxu0 0.0
        %1116 = vmatprep.subr.mxu0 0.0
        %1117 = vmatpush2.msra.mxu0 0.0
        %1118 = vmatprep.subr.mxu0 0.0
        %1119 = vmatpush2.msra.mxu0 0.0
        %1120 = vmatprep.mubr.f32.mxu0 0.0
        %1121 = vmatmul.mubr.f32.gmra.mxu0 %v903
        %v1122 = vpop.f32.mrf.mxu0
        %v1123 = vadd.f32 0.0, %v1122
        %v1124 = vpop.f32.mrf.mxu0
        %1125 = vmatprep.mubr.f32.mxu0 0.0
        %1126 = vmatmul.mubr.f32.gmra.mxu0 %v904
        %v1127 = vpop.f32.mrf.mxu0
        %v1128 = vadd.f32 0.0, %v1127
        %v1129 = vpop.f32.mrf.mxu0
        %1130 = vmatprep.mubr.f32.mxu0 0.0
        %1131 = vmatmul.mubr.f32.gmra.mxu0 %v905
        %v1132 = vpop.f32.mrf.mxu0
        %v1133 = vadd.f32 0.0, %v1132
        %v1134 = vpop.f32.mrf.mxu0
        %1135 = vmatprep.mubr.f32.mxu0 0.0
        %1136 = vmatmul.mubr.f32.gmra.mxu0 %v906
        %v1137 = vpop.f32.mrf.mxu0
        %v1138 = vadd.f32 0.0, %v1137
        %v1139 = vpop.f32.mrf.mxu0
        %1140 = vmatprep.mubr.f32.mxu0 0.0
        %1141 = vmatmul.mubr.f32.gmra.mxu0 %v907
        %v1142 = vpop.f32.mrf.mxu0
        %v1143 = vadd.f32 0.0, %v1142
        %v1144 = vpop.f32.mrf.mxu0
        %1145 = vmatprep.mubr.f32.mxu0 0.0
        %1146 = vmatmul.mubr.f32.gmra.mxu0 %v908
        %v1147 = vpop.f32.mrf.mxu0
        %v1148 = vadd.f32 0.0, %v1147
        %v1149 = vpop.f32.mrf.mxu0
        %1150 = vmatprep.mubr.f32.mxu0 0.0
        %1151 = vmatmul.mubr.f32.gmra.mxu0 %v909
        %v1152 = vpop.f32.mrf.mxu0
        %v1153 = vadd.f32 0.0, %v1152
        %v1154 = vpop.f32.mrf.mxu0
        %1155 = vmatprep.mubr.f32.mxu0 0.0
        %1156 = vmatmul.mubr.f32.gmra.mxu0 %v910
        %v1157 = vpop.f32.mrf.mxu0
        %v1158 = vadd.f32 0.0, %v1157
        %v1159 = vpop.f32.mrf.mxu0
        %1160 = vmatprep.mubr.f32.mxu0 0.0
        %1161 = vmatmul.mubr.f32.gmra.mxu0 %v911
        %v1162 = vpop.f32.mrf.mxu0
        %v1163 = vadd.f32 0.0, %v1162
        %v1164 = vpop.f32.mrf.mxu0
        %1165 = vmatprep.mubr.f32.mxu0 0.0
        %1166 = vmatmul.mubr.f32.gmra.mxu0 %v912
        %v1167 = vpop.f32.mrf.mxu0
        %v1168 = vadd.f32 0.0, %v1167
        %v1169 = vpop.f32.mrf.mxu0
        %1170 = vmatprep.mubr.f32.mxu0 0.0
        %1171 = vmatmul.mubr.f32.gmra.mxu0 %v913
        %v1172 = vpop.f32.mrf.mxu0
        %v1173 = vadd.f32 0.0, %v1172
        %v1174 = vpop.f32.mrf.mxu0
        %1175 = vmatprep.mubr.f32.mxu0 0.0
        %1176 = vmatmul.mubr.f32.gmra.mxu0 %v914
        %v1177 = vpop.f32.mrf.mxu0
        %v1178 = vadd.f32 0.0, %v1177
        %v1179 = vpop.f32.mrf.mxu0
        %1180 = vdwg.mxu0
        %1193 = vrot.lane.b32.xlu0 %v1123, 64
        %v1194 = vpop.permute.xlu0 %1193
        %1195 = vrot.lane.b32.xlu0 %v1128, 64
        %v1196 = vpop.permute.xlu0 %1195
        %1197 = vrot.lane.b32.xlu0 %v1133, 64
        %v1198 = vpop.permute.xlu0 %1197
        %1199 = vrot.lane.b32.xlu0 %v1138, 64
        %v1200 = vpop.permute.xlu0 %1199
        %1201 = vrot.lane.b32.xlu0 %v1143, 64
        %v1202 = vpop.permute.xlu0 %1201
        %1203 = vrot.lane.b32.xlu0 %v1148, 64
        %v1204 = vpop.permute.xlu0 %1203
        %1205 = vrot.lane.b32.xlu0 %v1153, 64
        %v1206 = vpop.permute.xlu0 %1205
        %1207 = vrot.lane.b32.xlu0 %v1158, 64
        %v1208 = vpop.permute.xlu0 %1207
        %1209 = vrot.lane.b32.xlu0 %v1163, 64
        %v1210 = vpop.permute.xlu0 %1209
        %1211 = vrot.lane.b32.xlu0 %v1168, 64
        %v1212 = vpop.permute.xlu0 %1211
        %1213 = vrot.lane.b32.xlu0 %v1173, 64
        %v1214 = vpop.permute.xlu0 %1213
        %1215 = vrot.lane.b32.xlu0 %v1178, 64
        %v1216 = vpop.permute.xlu0 %1215
        %vm1229 = vcmask 523264
        %v1230 = vsel %vm1229, %v998, %v1194
        %v1231 = vsel %vm1229, %v1003, %v1196
        %v1232 = vsel %vm1229, %v1008, %v1198
        %v1233 = vsel %vm1229, %v1013, %v1200
        %v1234 = vsel %vm1229, %v1018, %v1202
        %v1235 = vsel %vm1229, %v1023, %v1204
        %v1236 = vsel %vm1229, %v1028, %v1206
        %v1237 = vsel %vm1229, %v1033, %v1208
        %v1238 = vsel %vm1229, %v1038, %v1210
        %v1239 = vsel %vm1229, %v1043, %v1212
        %v1240 = vsel %vm1229, %v1048, %v1214
        %v1241 = vsel %vm1229, %v1053, %v1216
        %1242 = vst [vmem:[%s190] sm:$0xff] %v1230
        %1243 = vst [vmem:[%s190 + $0x8] sm:$0xff] %v1231
        %1244 = vst [vmem:[%s190 + $0x10] sm:$0xff] %v1232
        %1245 = vst [vmem:[%s190 + $0x18] sm:$0xff] %v1233
        %1246 = vst [vmem:[%s190 + $0x20] sm:$0xff] %v1234
        %1247 = vst [vmem:[%s190 + $0x28] sm:$0xff] %v1235
        %1248 = vst [vmem:[%s190 + $0x30] sm:$0xff] %v1236
        %1249 = vst [vmem:[%s190 + $0x38] sm:$0xff] %v1237
        %1250 = vst [vmem:[%s190 + $0x40] sm:$0xff] %v1238
        %1251 = vst [vmem:[%s190 + $0x48] sm:$0xff] %v1239
        %1252 = vst [vmem:[%s190 + $0x50] sm:$0xff] %v1240
        %1253 = vst [vmem:[%s190 + $0x58] sm:$0xff] %v1241
        %s1254 = sand.u32 %s115, 1
        %s1255 = scalar_lea.sflag [#allocation4], %s1254
        %s1256 = sand.u32 %s115, 1
        %s1257 = smul.addr %s1256, 96
        %s1258 = scalar_lea.vmem [#allocation3], %s1257
        // Predicated region
        $region37: #{tpu_custom_call.1} parent=35 // pred_check
          %p1259 = pneg %p125
        $region38: #{tpu_custom_call.1} parent=35 // pred_check_branch
          %1261 = sbr.rel (%p1259) target = $region40
        $region39: #{tpu_custom_call.1} parent=35 // pred_region
          %s1263 = ssub.s32 1536, 1536
          %1264 = vsyncadd %s1255, %s1263
          %s1265 = smul.addr %s18, 12
          %s1266 = smul.addr %s1265, 128
          %s1267 = scalar_lea.hbm %s4, %s1266
          %s1268 = sshll.u32 %s1258, 4
          %s1269 = int_to_ptr.vmem [resolvable:$true] %s1268
          %1274 = dma.vmem_to_hbm [thread:$0]  %s1269, 1536, %s1267, %s1255, 128, 128, 8
        $region40: #{tpu_custom_call.1} parent=35 // pred_fallthru
          _
      $region36: #{tpu_custom_call.1} parent=5 // pred_fallthru
        _
      %p1275 = scmp.le.s32.totalorder 2, %s13
      // Predicated region
      $region41: #{tpu_custom_call.1} parent=5 // pred_check
        %p1276 = pneg %p1275
      $region42: #{tpu_custom_call.1} parent=5 // pred_check_branch
        %1278 = sbr.rel (%p1276) target = $region44
      $region43: #{tpu_custom_call.1} parent=5 // pred_region
        %s1279 = ssub.s32 %s13, 2
        // Predicated region
        $region45: #{tpu_custom_call.1} parent=43 // pred_check
          %p1280 = pneg %p131
        $region46: #{tpu_custom_call.1} parent=43 // pred_check_branch
          %1282 = sbr.rel (%p1280) target = $region48
        $region47: #{tpu_custom_call.1} parent=43 // pred_region
          %s1283 = sand.u32 %s116, 1
          %s1284 = scalar_lea.sflag [#allocation4], %s1283
          %s1285 = sand.u32 %s116, 1
          %s1286 = smul.addr %s1285, 96
          %s1287 = scalar_lea.vmem [#allocation3], %s1286
          %1288 = dma.done %s1284, 1536
        $region48: #{tpu_custom_call.1} parent=43 // pred_fallthru
          _
      $region44: #{tpu_custom_call.1} parent=5 // pred_fallthru
        _
    $region6: #{tpu_custom_call.1} parent=1 // loop_footer
      %s17 = sadd.s32 1, %s13
    $region7: #{tpu_custom_call.1} parent=1 // loop_footer_branch
      %12 = sbr.rel target = $region3
    $region8: #{tpu_custom_call.1} parent=1 // loop_exit
      _
    %1289 = vsyncpa [#allocation4], 1
    %s1290 = scalar_lea.sflag [#allocation4], 1
    %1291 = vsyncpa %s1290, 1

</llo_original>
